<compile_context>
chip_gen: v7x
topology: tpu7x:2x2x1
jax: 0.10.0
libtpu: 0.0.40
codegen_flags: <defaults>
</compile_context>

<pallas_src>
import jax
import jax.numpy as jnp
from jax.experimental import pallas as pl
from jax.experimental.pallas import tpu as pltpu


def lstm_pool_kernel(seqx_ref, src_ref,
                     w_ih_ref, w_hh_ref, b_ref,
                     fc1_wa_ref, fc1_wb_ref, fc1_b_ref,
                     fc2_w_ref, fc2_b_ref,
                     out_ref, xp_ref):
    TB, F = out_ref.shape
    N, _, A = seqx_ref.shape
    G = 4 * F

    # ---- Hoisted input projection (independent of h -> off the serial chain).
    # Slab arrives time-major; one K=A MXU matmul over the whole N*TB block
    # (bias folded in), staged time-major into the VMEM scratch so every
    # recurrence step reads a contiguous [TB, 4F] tile.
    seqx = seqx_ref[...]
    w_ih = w_ih_ref[...]
    bias = b_ref[...]
    if TB % 8 == 0:
        xp = jnp.dot(seqx.reshape(N * TB, A), w_ih,
                     preferred_element_type=jnp.float32) + bias
        xp_ref[...] = xp.reshape(N, TB, G)
    else:
        # Tiny-batch fallback: per-step 2-D matmuls (still off the h-chain,
        # avoids a non-8-aligned leading-dim collapse).
        for t in range(N):
            xp_ref[t] = jnp.dot(seqx[t], w_ih,
                                preferred_element_type=jnp.float32) + bias

    w_hh = w_hh_ref[...]
    h = jnp.zeros((TB, F), jnp.float32)
    c = jnp.zeros((TB, F), jnp.float32)

    # ---- Fully unrolled LSTM recurrence (N static & small).  Gate columns
    # were pre-permuted to (i, f, o, g), so sigmoid covers the first 3F
    # columns and tanh only the last F — the per-step serial chain is
    # h @ W_hh, a 3F sigmoid, two F-wide tanh and a few elementwise ops.
    for t in range(N):
        gates = xp_ref[t] + jnp.dot(h.astype(w_hh.dtype), w_hh,
                                    preferred_element_type=jnp.float32)
        sig = jax.nn.sigmoid(gates[:, :3 * F])          # i | f | o
        g_g = jnp.tanh(gates[:, 3 * F:])                # g
        i_g = sig[:, 0 * F:1 * F]
        f_g = sig[:, 1 * F:2 * F]
        o_g = sig[:, 2 * F:3 * F]
        c = f_g * c + i_g * g_g
        h = o_g * jnp.tanh(c)

    # ---- MergeLayer: fc2(relu(fc1(cat([hn, src])))) — concat-free via split
    # fc1 weight halves.
    h1 = jnp.maximum(
        jnp.dot(h.astype(fc1_wa_ref.dtype), fc1_wa_ref[...],
                preferred_element_type=jnp.float32)
        + jnp.dot(src_ref[...].astype(fc1_wb_ref.dtype), fc1_wb_ref[...],
                  preferred_element_type=jnp.float32)
        + fc1_b_ref[...], 0.0)
    out_ref[...] = (jnp.dot(h1.astype(fc2_w_ref.dtype), fc2_w_ref[...],
                            preferred_element_type=jnp.float32)
                    + fc2_b_ref[...]).astype(out_ref.dtype)


def init_params(key, feat_dim, edge_dim, time_dim, *, param_dtype=jnp.float32):
    F, E, T = feat_dim, edge_dim, time_dim
    att_dim = F + E + T
    keys = jax.random.split(key, 8)

    # LSTM params: PyTorch default init U(-1/sqrt(H), 1/sqrt(H)); gate rows in
    # PyTorch order (i, f, g, o).
    k = 1.0 / jnp.sqrt(jnp.float32(F))
    w_ih = jax.random.uniform(keys[0], (4 * F, att_dim), jnp.float32, -k, k)
    w_hh = jax.random.uniform(keys[1], (4 * F, F), jnp.float32, -k, k)
    b_ih = jax.random.uniform(keys[2], (4 * F,), jnp.float32, -k, k)
    b_hh = jax.random.uniform(keys[3], (4 * F,), jnp.float32, -k, k)

    # Reorder gate blocks (i, f, g, o) -> (i, f, o, g): pure column permutation
    # of the packed weights, numerically identical gate math in the kernel.
    def reorder(w):
        return jnp.concatenate([w[:2 * F], w[3 * F:4 * F], w[2 * F:3 * F]],
                               axis=0)

    w_ih = reorder(w_ih)
    w_hh = reorder(w_hh)
    b = reorder(b_ih + b_hh)                    # combined LSTM bias, reordered

    # MergeLayer: xavier_normal_ weights, default-uniform biases.
    def xavier_normal(k_, shape):  # shape = (out, in)
        std = jnp.sqrt(2.0 / (shape[0] + shape[1]))
        return std * jax.random.normal(k_, shape, jnp.float32)

    fc1_w = xavier_normal(keys[4], (F, 2 * F))
    fc2_w = xavier_normal(keys[5], (F, F))
    b1 = 1.0 / jnp.sqrt(jnp.float32(2 * F))
    b2 = 1.0 / jnp.sqrt(jnp.float32(F))
    fc1_b = jax.random.uniform(keys[6], (F,), jnp.float32, -b1, b1)
    fc2_b = jax.random.uniform(keys[7], (F,), jnp.float32, -b2, b2)

    fc1_wt = fc1_w.T                            # [2F, F]; rows = [hn | src]
    wd = param_dtype
    return {
        "w_ih": w_ih.T.astype(wd),              # [A, 4F], cols (i,f,o,g)
        "w_hh": w_hh.T.astype(wd),              # [F, 4F], cols (i,f,o,g)
        "b": b.reshape(1, 4 * F),               # f32 (folded into f32 proj)
        "fc1_wa": fc1_wt[:F].astype(wd),        # [F, F]  (hn half)
        "fc1_wb": fc1_wt[F:].astype(wd),        # [F, F]  (src half)
        "fc1_b": fc1_b.reshape(1, F),
        "fc2_w": fc2_w.T.astype(wd),            # [F, F]
        "fc2_b": fc2_b.reshape(1, F),
    }


def _pick_batch_block(B):
    """Batch tile: guarantee >=2 grid steps when B >= 16 (v7x has 2 TCs and
    'parallel' axes can only shard grid steps), capped at 256 so a single-TC
    chip amortizes per-step latency over many rows."""
    if B < 16:
        return B
    cap = max(8, min(256, B // 2))
    best = None
    for cand in range(8, cap + 1, 8):
        if B % cand == 0:
            best = cand
    return best if best is not None else B


def lstm_pool_forward(params, src, src_t, seq, seq_t, seq_e, mask,
                      *, batch_block=None):
    # src_t and mask are unused, matching the PyTorch reference forward.
    B, N, F = seq.shape
    A = F + seq_e.shape[2] + seq_t.shape[2]
    G = 4 * F

    TB = _pick_batch_block(B) if batch_block is None else batch_block
    assert B % TB == 0

    wd = params["w_ih"].dtype
    # Single lane-dense input slab (one wide DMA + one K=A matmul instead of
    # three narrow ones), laid out time-major so the in-kernel staged
    # projection reads are contiguous per recurrence step.
    seq_x = jnp.concatenate([seq, seq_e, seq_t], axis=2)       # [B, N, A]
    seq_x = jnp.transpose(seq_x, (1, 0, 2)).astype(wd)         # [N, B, A]
    src_c = src.astype(wd)

    def resident(shape):  # weights resident in VMEM across the grid
        return pl.BlockSpec(shape, lambda b: (0,) * len(shape))

    out = pl.pallas_call(
        lstm_pool_kernel,
        out_shape=jax.ShapeDtypeStruct((B, F), jnp.float32),
        grid=(B // TB,),
        in_specs=[
            pl.BlockSpec((N, TB, A), lambda b: (0, b, 0)),     # seq_x (time-major)
            pl.BlockSpec((TB, F), lambda b: (b, 0)),           # src
            resident((A, G)),                                  # w_ih
            resident((F, G)),                                  # w_hh
            resident((1, G)),                                  # b
            resident((F, F)),                                  # fc1_wa
            resident((F, F)),                                  # fc1_wb
            resident((1, F)),                                  # fc1_b
            resident((F, F)),                                  # fc2_w
            resident((1, F)),                                  # fc2_b
        ],
        out_specs=pl.BlockSpec((TB, F), lambda b: (b, 0)),
        scratch_shapes=[pltpu.VMEM((N, TB, G), jnp.float32)],  # time-major x_proj
        compiler_params=pltpu.CompilerParams(
            dimension_semantics=("parallel",),
            vmem_limit_bytes=32 * 1024 * 1024),
    )(seq_x, src_c,
      params["w_ih"], params["w_hh"], params["b"],
      params["fc1_wa"], params["fc1_wb"], params["fc1_b"],
      params["fc2_w"], params["fc2_b"])
    return out, None


if __name__ == "__main__":
    feat_dim, edge_dim, time_dim = 32, 16, 16
    B, N = 8, 8

    key = jax.random.PRNGKey(0)
    kp, kd = jax.random.split(key)
    # For v6e/v7x throughput, pass param_dtype=jnp.bfloat16 (MXU-native,
    # halves DMA bytes); f32 default is numerically identical to the reference
    # and safe on v5e (no bf16 VPU/EUP there).
    params = init_params(kp, feat_dim, edge_dim, time_dim)

    ks = jax.random.split(kd, 6)
    src = jax.random.normal(ks[0], (B, feat_dim), jnp.float32)
    src_t = jax.random.normal(ks[1], (B, time_dim), jnp.float32)     # unused
    seq = jax.random.normal(ks[2], (B, N, feat_dim), jnp.float32)
    seq_t = jax.random.normal(ks[3], (B, N, time_dim), jnp.float32)
    seq_e = jax.random.normal(ks[4], (B, N, edge_dim), jnp.float32)
    mask = (jax.random.uniform(ks[5], (B, N)) > 0.5)                  # unused

    out, _ = lstm_pool_forward(params, src, src_t, seq, seq_t, seq_e, mask)
    jax.block_until_ready(out)
    assert out.shape == (B, feat_dim)
    print("KERNEL_OK")
</pallas_src>

<mosaic_0001>
module attributes {stable_mosaic.version = 11 : i64} {
  func.func @lstm_pool_kernel(%arg0: i32, %arg1: memref<8x8x64xf32, #tpu.memory_space<vmem>>, %arg2: memref<8x32xf32, #tpu.memory_space<vmem>>, %arg3: memref<64x128xf32, #tpu.memory_space<vmem>>, %arg4: memref<32x128xf32, #tpu.memory_space<vmem>>, %arg5: memref<1x128xf32, #tpu.memory_space<vmem>>, %arg6: memref<32x32xf32, #tpu.memory_space<vmem>>, %arg7: memref<32x32xf32, #tpu.memory_space<vmem>>, %arg8: memref<1x32xf32, #tpu.memory_space<vmem>>, %arg9: memref<32x32xf32, #tpu.memory_space<vmem>>, %arg10: memref<1x32xf32, #tpu.memory_space<vmem>>, %arg11: memref<8x32xf32, #tpu.memory_space<vmem>>, %arg12: memref<8x8x128xf32, #tpu.memory_space<vmem>>) attributes {dimension_semantics = [#tpu.dimension_semantics<parallel>], iteration_bounds = array<i64: 1>, scalar_prefetch = 0 : i64, scratch_operands = 1 : i64, tpu.core_type = #tpu.core_type<tc>, window_params = [{transform_indices = @transform_0, window_bounds = array<i64: 8, 8, 64>}, {transform_indices = @transform_1, window_bounds = array<i64: 8, 32>}, {pipeline_mode = #tpu.pipeline_mode<synchronous>, transform_indices = @transform_2, window_bounds = array<i64: 64, 128>}, {pipeline_mode = #tpu.pipeline_mode<synchronous>, transform_indices = @transform_3, window_bounds = array<i64: 32, 128>}, {pipeline_mode = #tpu.pipeline_mode<synchronous>, transform_indices = @transform_4, window_bounds = array<i64: 1, 128>}, {pipeline_mode = #tpu.pipeline_mode<synchronous>, transform_indices = @transform_5, window_bounds = array<i64: 32, 32>}, {pipeline_mode = #tpu.pipeline_mode<synchronous>, transform_indices = @transform_6, window_bounds = array<i64: 32, 32>}, {pipeline_mode = #tpu.pipeline_mode<synchronous>, transform_indices = @transform_7, window_bounds = array<i64: 1, 32>}, {pipeline_mode = #tpu.pipeline_mode<synchronous>, transform_indices = @transform_8, window_bounds = array<i64: 32, 32>}, {pipeline_mode = #tpu.pipeline_mode<synchronous>, transform_indices = @transform_9, window_bounds = array<i64: 1, 32>}, {transform_indices = @transform_10, window_bounds = array<i64: 8, 32>}]} {
    %c0 = arith.constant 0 : index
    %c0_0 = arith.constant 0 : index
    %c0_1 = arith.constant 0 : index
    %0 = vector.load %arg1[%c0, %c0_0, %c0_1] : memref<8x8x64xf32, #tpu.memory_space<vmem>>, vector<8x8x64xf32>
    %c0_2 = arith.constant 0 : index
    %c0_3 = arith.constant 0 : index
    %1 = vector.load %arg3[%c0_2, %c0_3] : memref<64x128xf32, #tpu.memory_space<vmem>>, vector<64x128xf32>
    %c0_4 = arith.constant 0 : index
    %c0_5 = arith.constant 0 : index
    %2 = vector.load %arg5[%c0_4, %c0_5] : memref<1x128xf32, #tpu.memory_space<vmem>>, vector<1x128xf32>
    %3 = vector.shape_cast %0 : vector<8x8x64xf32> to vector<64x64xf32>
    %cst = arith.constant dense<0.000000e+00> : vector<64x128xf32>
    %4 = tpu.matmul %3, %1, %cst {dimension_numbers = #tpu.dot_dimension_numbers<[1], [0], [0], [1], [0, 0, 1, 1], [], []>} : vector<64x64xf32>, vector<64x128xf32>, vector<64x128xf32> -> vector<64x128xf32>
    %5 = vector.broadcast %2 : vector<1x128xf32> to vector<64x128xf32>
    %6 = arith.addf %4, %5 : vector<64x128xf32>
    %7 = vector.shape_cast %6 : vector<64x128xf32> to vector<8x8x128xf32>
    %c0_6 = arith.constant 0 : index
    %c0_7 = arith.constant 0 : index
    %c0_8 = arith.constant 0 : index
    %8 = vector.load %arg12[%c0_6, %c0_7, %c0_8] : memref<8x8x128xf32, #tpu.memory_space<vmem>>, vector<8x8x128xf32>
    tpu.vector_store %arg12[%c0_6, %c0_7, %c0_8], %7 {strides = array<i32>} : memref<8x8x128xf32, #tpu.memory_space<vmem>>, vector<8x8x128xf32>,
    %c0_9 = arith.constant 0 : index
    %c0_10 = arith.constant 0 : index
    %9 = vector.load %arg4[%c0_9, %c0_10] : memref<32x128xf32, #tpu.memory_space<vmem>>, vector<32x128xf32>
    %cst_11 = arith.constant 0.000000e+00 : f32
    %10 = vector.broadcast %cst_11 : f32 to vector<8x32xf32>
    %cst_12 = arith.constant 0.000000e+00 : f32
    %11 = vector.broadcast %cst_12 : f32 to vector<8x32xf32>
    %c0_13 = arith.constant 0 : index
    %c0_14 = arith.constant 0 : index
    %c0_15 = arith.constant 0 : index
    %12 = vector.load %arg12[%c0_13, %c0_14, %c0_15] : memref<8x8x128xf32, #tpu.memory_space<vmem>>, vector<1x8x128xf32>
    %13 = vector.shape_cast %12 : vector<1x8x128xf32> to vector<8x128xf32>
    %cst_16 = arith.constant dense<0.000000e+00> : vector<8x128xf32>
    %14 = tpu.matmul %10, %9, %cst_16 {dimension_numbers = #tpu.dot_dimension_numbers<[1], [0], [0], [1], [0, 0, 1, 1], [], []>} : vector<8x32xf32>, vector<32x128xf32>, vector<8x128xf32> -> vector<8x128xf32>
    %15 = arith.addf %13, %14 : vector<8x128xf32>
    %16 = vector.extract_strided_slice %15 {offsets = [0, 0], sizes = [8, 96], strides = [1, 1]} : vector<8x128xf32> to vector<8x96xf32>
    %17 = arith.negf %16 : vector<8x96xf32>
    %18 = math.exp %17 : vector<8x96xf32>
    %cst_17 = arith.constant 1.000000e+00 : f32
    %19 = vector.broadcast %cst_17 : f32 to vector<8x96xf32>
    %20 = arith.addf %19, %18 : vector<8x96xf32>
    %21 = arith.divf %19, %20 : vector<8x96xf32>
    %22 = vector.extract_strided_slice %15 {offsets = [0, 96], sizes = [8, 32], strides = [1, 1]} : vector<8x128xf32> to vector<8x32xf32>
    %23 = math.tanh %22 : vector<8x32xf32>
    %24 = vector.extract_strided_slice %21 {offsets = [0, 0], sizes = [8, 32], strides = [1, 1]} : vector<8x96xf32> to vector<8x32xf32>
    %25 = vector.extract_strided_slice %21 {offsets = [0, 32], sizes = [8, 32], strides = [1, 1]} : vector<8x96xf32> to vector<8x32xf32>
    %26 = vector.extract_strided_slice %21 {offsets = [0, 64], sizes = [8, 32], strides = [1, 1]} : vector<8x96xf32> to vector<8x32xf32>
    %27 = arith.mulf %25, %11 : vector<8x32xf32>
    %28 = arith.mulf %24, %23 : vector<8x32xf32>
    %29 = arith.addf %27, %28 : vector<8x32xf32>
    %30 = math.tanh %29 : vector<8x32xf32>
    %31 = arith.mulf %26, %30 : vector<8x32xf32>
    %c1 = arith.constant 1 : index
    %c0_18 = arith.constant 0 : index
    %c0_19 = arith.constant 0 : index
    %32 = vector.load %arg12[%c1, %c0_18, %c0_19] : memref<8x8x128xf32, #tpu.memory_space<vmem>>, vector<1x8x128xf32>
    %33 = vector.shape_cast %32 : vector<1x8x128xf32> to vector<8x128xf32>
    %cst_20 = arith.constant dense<0.000000e+00> : vector<8x128xf32>
    %34 = tpu.matmul %31, %9, %cst_20 {dimension_numbers = #tpu.dot_dimension_numbers<[1], [0], [0], [1], [0, 0, 1, 1], [], []>} : vector<8x32xf32>, vector<32x128xf32>, vector<8x128xf32> -> vector<8x128xf32>
    %35 = arith.addf %33, %34 : vector<8x128xf32>
    %36 = vector.extract_strided_slice %35 {offsets = [0, 0], sizes = [8, 96], strides = [1, 1]} : vector<8x128xf32> to vector<8x96xf32>
    %37 = arith.negf %36 : vector<8x96xf32>
    %38 = math.exp %37 : vector<8x96xf32>
    %cst_21 = arith.constant 1.000000e+00 : f32
    %39 = vector.broadcast %cst_21 : f32 to vector<8x96xf32>
    %40 = arith.addf %39, %38 : vector<8x96xf32>
    %41 = arith.divf %39, %40 : vector<8x96xf32>
    %42 = vector.extract_strided_slice %35 {offsets = [0, 96], sizes = [8, 32], strides = [1, 1]} : vector<8x128xf32> to vector<8x32xf32>
    %43 = math.tanh %42 : vector<8x32xf32>
    %44 = vector.extract_strided_slice %41 {offsets = [0, 0], sizes = [8, 32], strides = [1, 1]} : vector<8x96xf32> to vector<8x32xf32>
    %45 = vector.extract_strided_slice %41 {offsets = [0, 32], sizes = [8, 32], strides = [1, 1]} : vector<8x96xf32> to vector<8x32xf32>
    %46 = vector.extract_strided_slice %41 {offsets = [0, 64], sizes = [8, 32], strides = [1, 1]} : vector<8x96xf32> to vector<8x32xf32>
    %47 = arith.mulf %45, %29 : vector<8x32xf32>
    %48 = arith.mulf %44, %43 : vector<8x32xf32>
    %49 = arith.addf %47, %48 : vector<8x32xf32>
    %50 = math.tanh %49 : vector<8x32xf32>
    %51 = arith.mulf %46, %50 : vector<8x32xf32>
    %c2 = arith.constant 2 : index
    %c0_22 = arith.constant 0 : index
    %c0_23 = arith.constant 0 : index
    %52 = vector.load %arg12[%c2, %c0_22, %c0_23] : memref<8x8x128xf32, #tpu.memory_space<vmem>>, vector<1x8x128xf32>
    %53 = vector.shape_cast %52 : vector<1x8x128xf32> to vector<8x128xf32>
    %cst_24 = arith.constant dense<0.000000e+00> : vector<8x128xf32>
    %54 = tpu.matmul %51, %9, %cst_24 {dimension_numbers = #tpu.dot_dimension_numbers<[1], [0], [0], [1], [0, 0, 1, 1], [], []>} : vector<8x32xf32>, vector<32x128xf32>, vector<8x128xf32> -> vector<8x128xf32>
    %55 = arith.addf %53, %54 : vector<8x128xf32>
    %56 = vector.extract_strided_slice %55 {offsets = [0, 0], sizes = [8, 96], strides = [1, 1]} : vector<8x128xf32> to vector<8x96xf32>
    %57 = arith.negf %56 : vector<8x96xf32>
    %58 = math.exp %57 : vector<8x96xf32>
    %cst_25 = arith.constant 1.000000e+00 : f32
    %59 = vector.broadcast %cst_25 : f32 to vector<8x96xf32>
    %60 = arith.addf %59, %58 : vector<8x96xf32>
    %61 = arith.divf %59, %60 : vector<8x96xf32>
    %62 = vector.extract_strided_slice %55 {offsets = [0, 96], sizes = [8, 32], strides = [1, 1]} : vector<8x128xf32> to vector<8x32xf32>
    %63 = math.tanh %62 : vector<8x32xf32>
    %64 = vector.extract_strided_slice %61 {offsets = [0, 0], sizes = [8, 32], strides = [1, 1]} : vector<8x96xf32> to vector<8x32xf32>
    %65 = vector.extract_strided_slice %61 {offsets = [0, 32], sizes = [8, 32], strides = [1, 1]} : vector<8x96xf32> to vector<8x32xf32>
    %66 = vector.extract_strided_slice %61 {offsets = [0, 64], sizes = [8, 32], strides = [1, 1]} : vector<8x96xf32> to vector<8x32xf32>
    %67 = arith.mulf %65, %49 : vector<8x32xf32>
    %68 = arith.mulf %64, %63 : vector<8x32xf32>
    %69 = arith.addf %67, %68 : vector<8x32xf32>
    %70 = math.tanh %69 : vector<8x32xf32>
    %71 = arith.mulf %66, %70 : vector<8x32xf32>
    %c3 = arith.constant 3 : index
    %c0_26 = arith.constant 0 : index
    %c0_27 = arith.constant 0 : index
    %72 = vector.load %arg12[%c3, %c0_26, %c0_27] : memref<8x8x128xf32, #tpu.memory_space<vmem>>, vector<1x8x128xf32>
    %73 = vector.shape_cast %72 : vector<1x8x128xf32> to vector<8x128xf32>
    %cst_28 = arith.constant dense<0.000000e+00> : vector<8x128xf32>
    %74 = tpu.matmul %71, %9, %cst_28 {dimension_numbers = #tpu.dot_dimension_numbers<[1], [0], [0], [1], [0, 0, 1, 1], [], []>} : vector<8x32xf32>, vector<32x128xf32>, vector<8x128xf32> -> vector<8x128xf32>
    %75 = arith.addf %73, %74 : vector<8x128xf32>
    %76 = vector.extract_strided_slice %75 {offsets = [0, 0], sizes = [8, 96], strides = [1, 1]} : vector<8x128xf32> to vector<8x96xf32>
    %77 = arith.negf %76 : vector<8x96xf32>
    %78 = math.exp %77 : vector<8x96xf32>
    %cst_29 = arith.constant 1.000000e+00 : f32
    %79 = vector.broadcast %cst_29 : f32 to vector<8x96xf32>
    %80 = arith.addf %79, %78 : vector<8x96xf32>
    %81 = arith.divf %79, %80 : vector<8x96xf32>
    %82 = vector.extract_strided_slice %75 {offsets = [0, 96], sizes = [8, 32], strides = [1, 1]} : vector<8x128xf32> to vector<8x32xf32>
    %83 = math.tanh %82 : vector<8x32xf32>
    %84 = vector.extract_strided_slice %81 {offsets = [0, 0], sizes = [8, 32], strides = [1, 1]} : vector<8x96xf32> to vector<8x32xf32>
    %85 = vector.extract_strided_slice %81 {offsets = [0, 32], sizes = [8, 32], strides = [1, 1]} : vector<8x96xf32> to vector<8x32xf32>
    %86 = vector.extract_strided_slice %81 {offsets = [0, 64], sizes = [8, 32], strides = [1, 1]} : vector<8x96xf32> to vector<8x32xf32>
    %87 = arith.mulf %85, %69 : vector<8x32xf32>
    %88 = arith.mulf %84, %83 : vector<8x32xf32>
    %89 = arith.addf %87, %88 : vector<8x32xf32>
    %90 = math.tanh %89 : vector<8x32xf32>
    %91 = arith.mulf %86, %90 : vector<8x32xf32>
    %c4 = arith.constant 4 : index
    %c0_30 = arith.constant 0 : index
    %c0_31 = arith.constant 0 : index
    %92 = vector.load %arg12[%c4, %c0_30, %c0_31] : memref<8x8x128xf32, #tpu.memory_space<vmem>>, vector<1x8x128xf32>
    %93 = vector.shape_cast %92 : vector<1x8x128xf32> to vector<8x128xf32>
    %cst_32 = arith.constant dense<0.000000e+00> : vector<8x128xf32>
    %94 = tpu.matmul %91, %9, %cst_32 {dimension_numbers = #tpu.dot_dimension_numbers<[1], [0], [0], [1], [0, 0, 1, 1], [], []>} : vector<8x32xf32>, vector<32x128xf32>, vector<8x128xf32> -> vector<8x128xf32>
    %95 = arith.addf %93, %94 : vector<8x128xf32>
    %96 = vector.extract_strided_slice %95 {offsets = [0, 0], sizes = [8, 96], strides = [1, 1]} : vector<8x128xf32> to vector<8x96xf32>
    %97 = arith.negf %96 : vector<8x96xf32>
    %98 = math.exp %97 : vector<8x96xf32>
    %cst_33 = arith.constant 1.000000e+00 : f32
    %99 = vector.broadcast %cst_33 : f32 to vector<8x96xf32>
    %100 = arith.addf %99, %98 : vector<8x96xf32>
    %101 = arith.divf %99, %100 : vector<8x96xf32>
    %102 = vector.extract_strided_slice %95 {offsets = [0, 96], sizes = [8, 32], strides = [1, 1]} : vector<8x128xf32> to vector<8x32xf32>
    %103 = math.tanh %102 : vector<8x32xf32>
    %104 = vector.extract_strided_slice %101 {offsets = [0, 0], sizes = [8, 32], strides = [1, 1]} : vector<8x96xf32> to vector<8x32xf32>
    %105 = vector.extract_strided_slice %101 {offsets = [0, 32], sizes = [8, 32], strides = [1, 1]} : vector<8x96xf32> to vector<8x32xf32>
    %106 = vector.extract_strided_slice %101 {offsets = [0, 64], sizes = [8, 32], strides = [1, 1]} : vector<8x96xf32> to vector<8x32xf32>
    %107 = arith.mulf %105, %89 : vector<8x32xf32>
    %108 = arith.mulf %104, %103 : vector<8x32xf32>
    %109 = arith.addf %107, %108 : vector<8x32xf32>
    %110 = math.tanh %109 : vector<8x32xf32>
    %111 = arith.mulf %106, %110 : vector<8x32xf32>
    %c5 = arith.constant 5 : index
    %c0_34 = arith.constant 0 : index
    %c0_35 = arith.constant 0 : index
    %112 = vector.load %arg12[%c5, %c0_34, %c0_35] : memref<8x8x128xf32, #tpu.memory_space<vmem>>, vector<1x8x128xf32>
    %113 = vector.shape_cast %112 : vector<1x8x128xf32> to vector<8x128xf32>
    %cst_36 = arith.constant dense<0.000000e+00> : vector<8x128xf32>
    %114 = tpu.matmul %111, %9, %cst_36 {dimension_numbers = #tpu.dot_dimension_numbers<[1], [0], [0], [1], [0, 0, 1, 1], [], []>} : vector<8x32xf32>, vector<32x128xf32>, vector<8x128xf32> -> vector<8x128xf32>
    %115 = arith.addf %113, %114 : vector<8x128xf32>
    %116 = vector.extract_strided_slice %115 {offsets = [0, 0], sizes = [8, 96], strides = [1, 1]} : vector<8x128xf32> to vector<8x96xf32>
    %117 = arith.negf %116 : vector<8x96xf32>
    %118 = math.exp %117 : vector<8x96xf32>
    %cst_37 = arith.constant 1.000000e+00 : f32
    %119 = vector.broadcast %cst_37 : f32 to vector<8x96xf32>
    %120 = arith.addf %119, %118 : vector<8x96xf32>
    %121 = arith.divf %119, %120 : vector<8x96xf32>
    %122 = vector.extract_strided_slice %115 {offsets = [0, 96], sizes = [8, 32], strides = [1, 1]} : vector<8x128xf32> to vector<8x32xf32>
    %123 = math.tanh %122 : vector<8x32xf32>
    %124 = vector.extract_strided_slice %121 {offsets = [0, 0], sizes = [8, 32], strides = [1, 1]} : vector<8x96xf32> to vector<8x32xf32>
    %125 = vector.extract_strided_slice %121 {offsets = [0, 32], sizes = [8, 32], strides = [1, 1]} : vector<8x96xf32> to vector<8x32xf32>
    %126 = vector.extract_strided_slice %121 {offsets = [0, 64], sizes = [8, 32], strides = [1, 1]} : vector<8x96xf32> to vector<8x32xf32>
    %127 = arith.mulf %125, %109 : vector<8x32xf32>
    %128 = arith.mulf %124, %123 : vector<8x32xf32>
    %129 = arith.addf %127, %128 : vector<8x32xf32>
    %130 = math.tanh %129 : vector<8x32xf32>
    %131 = arith.mulf %126, %130 : vector<8x32xf32>
    %c6 = arith.constant 6 : index
    %c0_38 = arith.constant 0 : index
    %c0_39 = arith.constant 0 : index
    %132 = vector.load %arg12[%c6, %c0_38, %c0_39] : memref<8x8x128xf32, #tpu.memory_space<vmem>>, vector<1x8x128xf32>
    %133 = vector.shape_cast %132 : vector<1x8x128xf32> to vector<8x128xf32>
    %cst_40 = arith.constant dense<0.000000e+00> : vector<8x128xf32>
    %134 = tpu.matmul %131, %9, %cst_40 {dimension_numbers = #tpu.dot_dimension_numbers<[1], [0], [0], [1], [0, 0, 1, 1], [], []>} : vector<8x32xf32>, vector<32x128xf32>, vector<8x128xf32> -> vector<8x128xf32>
    %135 = arith.addf %133, %134 : vector<8x128xf32>
    %136 = vector.extract_strided_slice %135 {offsets = [0, 0], sizes = [8, 96], strides = [1, 1]} : vector<8x128xf32> to vector<8x96xf32>
    %137 = arith.negf %136 : vector<8x96xf32>
    %138 = math.exp %137 : vector<8x96xf32>
    %cst_41 = arith.constant 1.000000e+00 : f32
    %139 = vector.broadcast %cst_41 : f32 to vector<8x96xf32>
    %140 = arith.addf %139, %138 : vector<8x96xf32>
    %141 = arith.divf %139, %140 : vector<8x96xf32>
    %142 = vector.extract_strided_slice %135 {offsets = [0, 96], sizes = [8, 32], strides = [1, 1]} : vector<8x128xf32> to vector<8x32xf32>
    %143 = math.tanh %142 : vector<8x32xf32>
    %144 = vector.extract_strided_slice %141 {offsets = [0, 0], sizes = [8, 32], strides = [1, 1]} : vector<8x96xf32> to vector<8x32xf32>
    %145 = vector.extract_strided_slice %141 {offsets = [0, 32], sizes = [8, 32], strides = [1, 1]} : vector<8x96xf32> to vector<8x32xf32>
    %146 = vector.extract_strided_slice %141 {offsets = [0, 64], sizes = [8, 32], strides = [1, 1]} : vector<8x96xf32> to vector<8x32xf32>
    %147 = arith.mulf %145, %129 : vector<8x32xf32>
    %148 = arith.mulf %144, %143 : vector<8x32xf32>
    %149 = arith.addf %147, %148 : vector<8x32xf32>
    %150 = math.tanh %149 : vector<8x32xf32>
    %151 = arith.mulf %146, %150 : vector<8x32xf32>
    %c7 = arith.constant 7 : index
    %c0_42 = arith.constant 0 : index
    %c0_43 = arith.constant 0 : index
    %152 = vector.load %arg12[%c7, %c0_42, %c0_43] : memref<8x8x128xf32, #tpu.memory_space<vmem>>, vector<1x8x128xf32>
    %153 = vector.shape_cast %152 : vector<1x8x128xf32> to vector<8x128xf32>
    %cst_44 = arith.constant dense<0.000000e+00> : vector<8x128xf32>
    %154 = tpu.matmul %151, %9, %cst_44 {dimension_numbers = #tpu.dot_dimension_numbers<[1], [0], [0], [1], [0, 0, 1, 1], [], []>} : vector<8x32xf32>, vector<32x128xf32>, vector<8x128xf32> -> vector<8x128xf32>
    %155 = arith.addf %153, %154 : vector<8x128xf32>
    %156 = vector.extract_strided_slice %155 {offsets = [0, 0], sizes = [8, 96], strides = [1, 1]} : vector<8x128xf32> to vector<8x96xf32>
    %157 = arith.negf %156 : vector<8x96xf32>
    %158 = math.exp %157 : vector<8x96xf32>
    %cst_45 = arith.constant 1.000000e+00 : f32
    %159 = vector.broadcast %cst_45 : f32 to vector<8x96xf32>
    %160 = arith.addf %159, %158 : vector<8x96xf32>
    %161 = arith.divf %159, %160 : vector<8x96xf32>
    %162 = vector.extract_strided_slice %155 {offsets = [0, 96], sizes = [8, 32], strides = [1, 1]} : vector<8x128xf32> to vector<8x32xf32>
    %163 = math.tanh %162 : vector<8x32xf32>
    %164 = vector.extract_strided_slice %161 {offsets = [0, 0], sizes = [8, 32], strides = [1, 1]} : vector<8x96xf32> to vector<8x32xf32>
    %165 = vector.extract_strided_slice %161 {offsets = [0, 32], sizes = [8, 32], strides = [1, 1]} : vector<8x96xf32> to vector<8x32xf32>
    %166 = vector.extract_strided_slice %161 {offsets = [0, 64], sizes = [8, 32], strides = [1, 1]} : vector<8x96xf32> to vector<8x32xf32>
    %167 = arith.mulf %165, %149 : vector<8x32xf32>
    %168 = arith.mulf %164, %163 : vector<8x32xf32>
    %169 = arith.addf %167, %168 : vector<8x32xf32>
    %170 = math.tanh %169 : vector<8x32xf32>
    %171 = arith.mulf %166, %170 : vector<8x32xf32>
    %c0_46 = arith.constant 0 : index
    %c0_47 = arith.constant 0 : index
    %172 = vector.load %arg6[%c0_46, %c0_47] : memref<32x32xf32, #tpu.memory_space<vmem>>, vector<32x32xf32>
    %cst_48 = arith.constant dense<0.000000e+00> : vector<8x32xf32>
    %173 = tpu.matmul %171, %172, %cst_48 {dimension_numbers = #tpu.dot_dimension_numbers<[1], [0], [0], [1], [0, 0, 1, 1], [], []>} : vector<8x32xf32>, vector<32x32xf32>, vector<8x32xf32> -> vector<8x32xf32>
    %c0_49 = arith.constant 0 : index
    %c0_50 = arith.constant 0 : index
    %174 = vector.load %arg2[%c0_49, %c0_50] : memref<8x32xf32, #tpu.memory_space<vmem>>, vector<8x32xf32>
    %c0_51 = arith.constant 0 : index
    %c0_52 = arith.constant 0 : index
    %175 = vector.load %arg7[%c0_51, %c0_52] : memref<32x32xf32, #tpu.memory_space<vmem>>, vector<32x32xf32>
    %cst_53 = arith.constant dense<0.000000e+00> : vector<8x32xf32>
    %176 = tpu.matmul %174, %175, %cst_53 {dimension_numbers = #tpu.dot_dimension_numbers<[1], [0], [0], [1], [0, 0, 1, 1], [], []>} : vector<8x32xf32>, vector<32x32xf32>, vector<8x32xf32> -> vector<8x32xf32>
    %177 = arith.addf %173, %176 : vector<8x32xf32>
    %c0_54 = arith.constant 0 : index
    %c0_55 = arith.constant 0 : index
    %178 = vector.load %arg8[%c0_54, %c0_55] : memref<1x32xf32, #tpu.memory_space<vmem>>, vector<1x32xf32>
    %179 = vector.broadcast %178 : vector<1x32xf32> to vector<8x32xf32>
    %180 = arith.addf %177, %179 : vector<8x32xf32>
    %cst_56 = arith.constant 0.000000e+00 : f32
    %181 = vector.broadcast %cst_56 : f32 to vector<8x32xf32>
    %182 = arith.maximumf %180, %181 : vector<8x32xf32>
    %c0_57 = arith.constant 0 : index
    %c0_58 = arith.constant 0 : index
    %183 = vector.load %arg9[%c0_57, %c0_58] : memref<32x32xf32, #tpu.memory_space<vmem>>, vector<32x32xf32>
    %cst_59 = arith.constant dense<0.000000e+00> : vector<8x32xf32>
    %184 = tpu.matmul %182, %183, %cst_59 {dimension_numbers = #tpu.dot_dimension_numbers<[1], [0], [0], [1], [0, 0, 1, 1], [], []>} : vector<8x32xf32>, vector<32x32xf32>, vector<8x32xf32> -> vector<8x32xf32>
    %c0_60 = arith.constant 0 : index
    %c0_61 = arith.constant 0 : index
    %185 = vector.load %arg10[%c0_60, %c0_61] : memref<1x32xf32, #tpu.memory_space<vmem>>, vector<1x32xf32>
    %186 = vector.broadcast %185 : vector<1x32xf32> to vector<8x32xf32>
    %187 = arith.addf %184, %186 : vector<8x32xf32>
    %c0_62 = arith.constant 0 : index
    %c0_63 = arith.constant 0 : index
    %188 = vector.load %arg11[%c0_62, %c0_63] : memref<8x32xf32, #tpu.memory_space<vmem>>, vector<8x32xf32>
    tpu.vector_store %arg11[%c0_62, %c0_63], %187 {strides = array<i32>} : memref<8x32xf32, #tpu.memory_space<vmem>>, vector<8x32xf32>,
    return
  }
  func.func @transform_0(%arg0: i32) -> (i32, i32, i32) {
    %c0_i32 = arith.constant 0 : i32
    %c0_i32_0 = arith.constant 0 : i32
    %c0_i32_1 = arith.constant 0 : i32
    return %c0_i32, %arg0, %c0_i32_0 : i32, i32, i32
  }
  func.func @transform_1(%arg0: i32) -> (i32, i32) {
    %c0_i32 = arith.constant 0 : i32
    %c0_i32_0 = arith.constant 0 : i32
    return %arg0, %c0_i32 : i32, i32
  }
  func.func @transform_2(%arg0: i32) -> (i32, i32) {
    %c0_i32 = arith.constant 0 : i32
    %c0_i32_0 = arith.constant 0 : i32
    %c0_i32_1 = arith.constant 0 : i32
    return %c0_i32, %c0_i32_0 : i32, i32
  }
  func.func @transform_3(%arg0: i32) -> (i32, i32) {
    %c0_i32 = arith.constant 0 : i32
    %c0_i32_0 = arith.constant 0 : i32
    %c0_i32_1 = arith.constant 0 : i32
    return %c0_i32, %c0_i32_0 : i32, i32
  }
  func.func @transform_4(%arg0: i32) -> (i32, i32) {
    %c0_i32 = arith.constant 0 : i32
    %c0_i32_0 = arith.constant 0 : i32
    %c0_i32_1 = arith.constant 0 : i32
    return %c0_i32, %c0_i32_0 : i32, i32
  }
  func.func @transform_5(%arg0: i32) -> (i32, i32) {
    %c0_i32 = arith.constant 0 : i32
    %c0_i32_0 = arith.constant 0 : i32
    %c0_i32_1 = arith.constant 0 : i32
    return %c0_i32, %c0_i32_0 : i32, i32
  }
  func.func @transform_6(%arg0: i32) -> (i32, i32) {
    %c0_i32 = arith.constant 0 : i32
    %c0_i32_0 = arith.constant 0 : i32
    %c0_i32_1 = arith.constant 0 : i32
    return %c0_i32, %c0_i32_0 : i32, i32
  }
  func.func @transform_7(%arg0: i32) -> (i32, i32) {
    %c0_i32 = arith.constant 0 : i32
    %c0_i32_0 = arith.constant 0 : i32
    %c0_i32_1 = arith.constant 0 : i32
    return %c0_i32, %c0_i32_0 : i32, i32
  }
  func.func @transform_8(%arg0: i32) -> (i32, i32) {
    %c0_i32 = arith.constant 0 : i32
    %c0_i32_0 = arith.constant 0 : i32
    %c0_i32_1 = arith.constant 0 : i32
    return %c0_i32, %c0_i32_0 : i32, i32
  }
  func.func @transform_9(%arg0: i32) -> (i32, i32) {
    %c0_i32 = arith.constant 0 : i32
    %c0_i32_0 = arith.constant 0 : i32
    %c0_i32_1 = arith.constant 0 : i32
    return %c0_i32, %c0_i32_0 : i32, i32
  }
  func.func @transform_10(%arg0: i32) -> (i32, i32) {
    %c0_i32 = arith.constant 0 : i32
    %c0_i32_0 = arith.constant 0 : i32
    return %arg0, %c0_i32 : i32, i32
  }
}

</mosaic_0001>

<llo_original>
// kernel: tpu_custom_call.1
$region0: #{tpu_custom_call.1}
  #allocation0 [shape = 'u32[]', space=smem, size = 0x4, offset = 0x4, fixed_abs, tag = 'smem constant byte address 0x4 - core index']
  #allocation1 [shape = 'u32[144,128]{1,0:T(1,128)}', space=vmem, size = 0x12000, scoped, tag = 'internal scratch']
  #allocation2 [shape = 'f32[8,8,128]{2,1,0:T(8,128)}', space=vmem, size = 0x8000, scoped, tag = 'scratch operand']
  %s0 = inlined_call_operand.hbm [shape: f32[8,8,64], index: 0, kind: input, shape index: {}]
  %s1 = inlined_call_operand.hbm [shape: f32[8,32], index: 1, kind: input, shape index: {}]
  %s2 = inlined_call_operand.hbm [shape: f32[64,128], index: 2, kind: input, shape index: {}]
  %s3 = inlined_call_operand.hbm [shape: f32[32,128], index: 3, kind: input, shape index: {}]
  %s4 = inlined_call_operand.vmem [shape: f32[1,128], index: 4, kind: input, shape index: {}]
  %s5 = inlined_call_operand.hbm [shape: f32[32,32], index: 5, kind: input, shape index: {}]
  %s6 = inlined_call_operand.hbm [shape: f32[32,32], index: 6, kind: input, shape index: {}]
  %s7 = inlined_call_operand.vmem [shape: f32[1,32], index: 7, kind: input, shape index: {}]
  %s8 = inlined_call_operand.hbm [shape: f32[32,32], index: 8, kind: input, shape index: {}]
  %s9 = inlined_call_operand.vmem [shape: f32[1,32], index: 9, kind: input, shape index: {}]
  %s10 = inlined_call_operand.hbm [shape: f32[8,32], index: 10, kind: output, shape index: {}]
  %s11 = sld [smem:[#allocation0]]
  $region78: #{tpu_custom_call.1} parent=0
    _
  %s13 = ssub.s32 1, %s11
  %s14 = scalar_select 0, %s13, %s11
  $region1: #{tpu_custom_call.1} parent=0
    #allocation3 [shape = 'u8[32768]{0}', space=vmem, size = 0x8000, scoped, tag = 'input window, operand 0, single buffered']
    #allocation4 [shape = 's32[1]{0}', space=sflag, size = 0x4, scoped, tag = 'scoped memory for tpu_custom_call.1']
    #allocation5 [shape = 's32[1]{0}', space=sflag, size = 0x4, scoped, tag = 'scoped memory for tpu_custom_call.1']
    #allocation6 [shape = 'u8[4096]{0}', space=vmem, size = 0x1000, scoped, tag = 'input window, operand 1, single buffered']
    #allocation7 [shape = 's32[1]{0}', space=sflag, size = 0x4, scoped, tag = 'scoped memory for tpu_custom_call.1']
    #allocation8 [shape = 'u8[32768]{0}', space=vmem, size = 0x8000, scoped, tag = 'input window, operand 2, single buffered']
    #allocation9 [shape = 'u8[16384]{0}', space=vmem, size = 0x4000, scoped, tag = 'input window, operand 3, single buffered']
    #allocation10 [shape = 's32[1]{0}', space=sflag, size = 0x4, scoped, tag = 'scoped memory for tpu_custom_call.1']
    #allocation11 [shape = 'u8[16384]{0}', space=vmem, size = 0x4000, scoped, tag = 'input window, operand 5, single buffered']
    #allocation12 [shape = 'u8[16384]{0}', space=vmem, size = 0x4000, scoped, tag = 'input window, operand 6, single buffered']
    #allocation13 [shape = 's32[1]{0}', space=sflag, size = 0x4, scoped, tag = 'scoped memory for tpu_custom_call.1']
    #allocation14 [shape = 'u8[16384]{0}', space=vmem, size = 0x4000, scoped, tag = 'input window, operand 8, single buffered']
    #allocation15 [shape = 'u8[4096]{0}', space=vmem, size = 0x1000, scoped, tag = 'output window, operand 0, single buffered']
    %15 = vsyncpa [#allocation4], 0
    %16 = vsyncpa [#allocation7], 0
    %17 = vsyncpa [#allocation10], 0
    %18 = vsyncpa [#allocation13], 0
    %19 = vsyncpa [#allocation5], 0
    // Predicated region
    $region2: #{tpu_custom_call.1} parent=1 // pred_check
      _
    $region3: #{tpu_custom_call.1} parent=1 // pred_check_branch
      %21 = sbr.rel (0) target = $region5
    $region4: #{tpu_custom_call.1} parent=1 // pred_region
      %s23 = ssub.s32 1024, 1024
      %24 = vsyncadd [#allocation4], %s23
      %s25 = sshll.u32 [#allocation3], 4
      %s26 = int_to_ptr.vmem [resolvable:$true] %s25
      %31 = dma.hbm_to_vmem [thread:$0]  %s0, 1024, %s26, [#allocation4], 128, 128, 8
    $region5: #{tpu_custom_call.1} parent=1 // pred_fallthru
      _
    // Predicated region
    $region6: #{tpu_custom_call.1} parent=1 // pred_check
      _
    $region7: #{tpu_custom_call.1} parent=1 // pred_check_branch
      %33 = sbr.rel (0) target = $region9
    $region8: #{tpu_custom_call.1} parent=1 // pred_region
      %s35 = ssub.s32 128, 128
      %36 = vsyncadd [#allocation7], %s35
      %s38 = sshll.u32 [#allocation6], 4
      %s39 = int_to_ptr.vmem [resolvable:$true] %s38
      %41 = dma.hbm_to_vmem [thread:$0]  %s1, 128, %s39, [#allocation7]
    $region9: #{tpu_custom_call.1} parent=1 // pred_fallthru
      _
    // Predicated region
    $region10: #{tpu_custom_call.1} parent=1 // pred_check
      _
    $region11: #{tpu_custom_call.1} parent=1 // pred_check_branch
      %43 = sbr.rel (0) target = $region13
    $region12: #{tpu_custom_call.1} parent=1 // pred_region
      %s45 = ssub.s32 1024, 1024
      %46 = vsyncadd [#allocation7], %s45
      %s47 = sshll.u32 [#allocation8], 4
      %s48 = int_to_ptr.vmem [resolvable:$true] %s47
      %53 = dma.hbm_to_vmem [thread:$0]  %s2, 1024, %s48, [#allocation7], 128, 128, 8
    $region13: #{tpu_custom_call.1} parent=1 // pred_fallthru
      _
    // Predicated region
    $region14: #{tpu_custom_call.1} parent=1 // pred_check
      _
    $region15: #{tpu_custom_call.1} parent=1 // pred_check_branch
      %55 = sbr.rel (0) target = $region17
    $region16: #{tpu_custom_call.1} parent=1 // pred_region
      %s57 = ssub.s32 512, 512
      %58 = vsyncadd [#allocation10], %s57
      %s59 = sshll.u32 [#allocation9], 4
      %s60 = int_to_ptr.vmem [resolvable:$true] %s59
      %65 = dma.hbm_to_vmem [thread:$0]  %s3, 512, %s60, [#allocation10], 128, 128, 8
    $region17: #{tpu_custom_call.1} parent=1 // pred_fallthru
      _
    // Predicated region
    $region18: #{tpu_custom_call.1} parent=1 // pred_check
      _
    $region19: #{tpu_custom_call.1} parent=1 // pred_check_branch
      %67 = sbr.rel (0) target = $region21
    $region20: #{tpu_custom_call.1} parent=1 // pred_region
      _
    $region21: #{tpu_custom_call.1} parent=1 // pred_fallthru
      _
    // Predicated region
    $region22: #{tpu_custom_call.1} parent=1 // pred_check
      _
    $region23: #{tpu_custom_call.1} parent=1 // pred_check_branch
      %69 = sbr.rel (0) target = $region25
    $region24: #{tpu_custom_call.1} parent=1 // pred_region
      %s71 = ssub.s32 512, 512
      %72 = vsyncadd [#allocation10], %s71
      %s73 = sshll.u32 [#allocation11], 4
      %s74 = int_to_ptr.vmem [resolvable:$true] %s73
      %79 = dma.hbm_to_vmem [thread:$0]  %s5, 512, %s74, [#allocation10], 128, 128, 8
    $region25: #{tpu_custom_call.1} parent=1 // pred_fallthru
      _
    // Predicated region
    $region26: #{tpu_custom_call.1} parent=1 // pred_check
      _
    $region27: #{tpu_custom_call.1} parent=1 // pred_check_branch
      %81 = sbr.rel (0) target = $region29
    $region28: #{tpu_custom_call.1} parent=1 // pred_region
      %s83 = ssub.s32 512, 512
      %84 = vsyncadd [#allocation13], %s83
      %s85 = sshll.u32 [#allocation12], 4
      %s86 = int_to_ptr.vmem [resolvable:$true] %s85
      %91 = dma.hbm_to_vmem [thread:$0]  %s6, 512, %s86, [#allocation13], 128, 128, 8
    $region29: #{tpu_custom_call.1} parent=1 // pred_fallthru
      _
    // Predicated region
    $region30: #{tpu_custom_call.1} parent=1 // pred_check
      _
    $region31: #{tpu_custom_call.1} parent=1 // pred_check_branch
      %93 = sbr.rel (0) target = $region33
    $region32: #{tpu_custom_call.1} parent=1 // pred_region
      _
    $region33: #{tpu_custom_call.1} parent=1 // pred_fallthru
      _
    // Predicated region
    $region34: #{tpu_custom_call.1} parent=1 // pred_check
      _
    $region35: #{tpu_custom_call.1} parent=1 // pred_check_branch
      %95 = sbr.rel (0) target = $region37
    $region36: #{tpu_custom_call.1} parent=1 // pred_region
      %s97 = ssub.s32 512, 512
      %98 = vsyncadd [#allocation13], %s97
      %s99 = sshll.u32 [#allocation14], 4
      %s100 = int_to_ptr.vmem [resolvable:$true] %s99
      %105 = dma.hbm_to_vmem [thread:$0]  %s8, 512, %s100, [#allocation13], 128, 128, 8
    $region37: #{tpu_custom_call.1} parent=1 // pred_fallthru
      _
    // Predicated region
    $region38: #{tpu_custom_call.1} parent=1 // pred_check
      _
    $region39: #{tpu_custom_call.1} parent=1 // pred_check_branch
      %107 = sbr.rel (0) target = $region41
    $region40: #{tpu_custom_call.1} parent=1 // pred_region
      _
    $region41: #{tpu_custom_call.1} parent=1 // pred_fallthru
      _
    // Predicated region
    $region42: #{tpu_custom_call.1} parent=1 // pred_check
      _
    $region43: #{tpu_custom_call.1} parent=1 // pred_check_branch
      %109 = sbr.rel (0) target = $region45
    $region44: #{tpu_custom_call.1} parent=1 // pred_region
      %110 = dma.done [#allocation4], 1024
    $region45: #{tpu_custom_call.1} parent=1 // pred_fallthru
      _
    // Predicated region
    $region46: #{tpu_custom_call.1} parent=1 // pred_check
      _
    $region47: #{tpu_custom_call.1} parent=1 // pred_check_branch
      %112 = sbr.rel (0) target = $region49
    $region48: #{tpu_custom_call.1} parent=1 // pred_region
      %113 = dma.done [#allocation7], 128
    $region49: #{tpu_custom_call.1} parent=1 // pred_fallthru
      _
    // Predicated region
    $region50: #{tpu_custom_call.1} parent=1 // pred_check
      _
    $region51: #{tpu_custom_call.1} parent=1 // pred_check_branch
      %115 = sbr.rel (0) target = $region53
    $region52: #{tpu_custom_call.1} parent=1 // pred_region
      %116 = dma.done [#allocation7], 1024
    $region53: #{tpu_custom_call.1} parent=1 // pred_fallthru
      _
    // Predicated region
    $region54: #{tpu_custom_call.1} parent=1 // pred_check
      _
    $region55: #{tpu_custom_call.1} parent=1 // pred_check_branch
      %118 = sbr.rel (0) target = $region57
    $region56: #{tpu_custom_call.1} parent=1 // pred_region
      %119 = dma.done [#allocation10], 512
    $region57: #{tpu_custom_call.1} parent=1 // pred_fallthru
      _
    // Predicated region
    $region58: #{tpu_custom_call.1} parent=1 // pred_check
      _
    $region59: #{tpu_custom_call.1} parent=1 // pred_check_branch
      %121 = sbr.rel (0) target = $region61
    $region60: #{tpu_custom_call.1} parent=1 // pred_region
      %122 = dma.done [#allocation10], 512
    $region61: #{tpu_custom_call.1} parent=1 // pred_fallthru
      _
    // Predicated region
    $region62: #{tpu_custom_call.1} parent=1 // pred_check
      _
    $region63: #{tpu_custom_call.1} parent=1 // pred_check_branch
      %124 = sbr.rel (0) target = $region65
    $region64: #{tpu_custom_call.1} parent=1 // pred_region
      %125 = dma.done [#allocation13], 512
    $region65: #{tpu_custom_call.1} parent=1 // pred_fallthru
      _
    // Predicated region
    $region66: #{tpu_custom_call.1} parent=1 // pred_check
      _
    $region67: #{tpu_custom_call.1} parent=1 // pred_check_branch
      %127 = sbr.rel (0) target = $region69
    $region68: #{tpu_custom_call.1} parent=1 // pred_region
      %128 = dma.done [#allocation13], 512
    $region69: #{tpu_custom_call.1} parent=1 // pred_fallthru
      _
    %v129 = vld [vmem:[#allocation3] sm:$0xff]
    %v130 = vld [vmem:[#allocation3 + $0x8] sm:$0xff]
    %v131 = vld [vmem:[#allocation3 + $0x10] sm:$0xff]
    %v132 = vld [vmem:[#allocation3 + $0x18] sm:$0xff]
    %v133 = vld [vmem:[#allocation3 + $0x20] sm:$0xff]
    %v134 = vld [vmem:[#allocation3 + $0x28] sm:$0xff]
    %v135 = vld [vmem:[#allocation3 + $0x30] sm:$0xff]
    %v136 = vld [vmem:[#allocation3 + $0x38] sm:$0xff]
    %v137 = vld [vmem:[#allocation8] sm:$0xff]
    %v138 = vld [vmem:[#allocation8 + $0x8] sm:$0xff]
    %v139 = vld [vmem:[#allocation8 + $0x10] sm:$0xff]
    %v140 = vld [vmem:[#allocation8 + $0x18] sm:$0xff]
    %v141 = vld [vmem:[#allocation8 + $0x20] sm:$0xff]
    %v142 = vld [vmem:[#allocation8 + $0x28] sm:$0xff]
    %v143 = vld [vmem:[#allocation8 + $0x30] sm:$0xff]
    %v144 = vld [vmem:[#allocation8 + $0x38] sm:$0xff]
    %v145 = vld [vmem:[%s4] sm:$0x1]
    %v147 = vlaneseq
    %v148 = vshrl.u32 %v147, 7
    %v149 = vsub.s32 0, %v148
    %v150 = vrot.slane %v145, %v149
    %vm152 = vcmask 523264
    %v154 = vsel %vm152, %v129, 0
    %v157 = vsel %vm152, %v130, 0
    %v160 = vsel %vm152, %v131, 0
    %v163 = vsel %vm152, %v132, 0
    %v166 = vsel %vm152, %v133, 0
    %v169 = vsel %vm152, %v134, 0
    %v172 = vsel %vm152, %v135, 0
    %v175 = vsel %vm152, %v136, 0
    %177 = vmatprep.subr.mxu0 0.0
    %178 = vmatpush1.msra.mxu0 %v137
    %179 = vmatprep.subr.mxu0 0.0
    %180 = vmatpush1.msra.mxu0 %v138
    %181 = vmatprep.subr.mxu0 0.0
    %182 = vmatpush1.msra.mxu0 %v139
    %183 = vmatprep.subr.mxu0 0.0
    %184 = vmatpush1.msra.mxu0 %v140
    %185 = vmatprep.subr.mxu0 0.0
    %186 = vmatpush1.msra.mxu0 %v141
    %187 = vmatprep.subr.mxu0 0.0
    %188 = vmatpush1.msra.mxu0 %v142
    %189 = vmatprep.subr.mxu0 0.0
    %190 = vmatpush1.msra.mxu0 %v143
    %191 = vmatprep.subr.mxu0 0.0
    %192 = vmatpush1.msra.mxu0 %v144
    %193 = vmatprep.subr.mxu0 0.0
    %194 = vmatpush1.msra.mxu0 0.0
    %195 = vmatprep.subr.mxu0 0.0
    %196 = vmatpush1.msra.mxu0 0.0
    %197 = vmatprep.subr.mxu0 0.0
    %198 = vmatpush1.msra.mxu0 0.0
    %199 = vmatprep.subr.mxu0 0.0
    %200 = vmatpush1.msra.mxu0 0.0
    %201 = vmatprep.subr.mxu0 0.0
    %202 = vmatpush1.msra.mxu0 0.0
    %203 = vmatprep.subr.mxu0 0.0
    %204 = vmatpush1.msra.mxu0 0.0
    %205 = vmatprep.subr.mxu0 0.0
    %206 = vmatpush1.msra.mxu0 0.0
    %207 = vmatprep.subr.mxu0 0.0
    %208 = vmatpush1.msra.mxu0 0.0
    %209 = vmatprep.subr.mxu0 0.0
    %210 = vmatpush1.msra.mxu0 0.0
    %211 = vmatprep.subr.mxu0 0.0
    %212 = vmatpush1.msra.mxu0 0.0
    %213 = vmatprep.subr.mxu0 0.0
    %214 = vmatpush1.msra.mxu0 0.0
    %215 = vmatprep.subr.mxu0 0.0
    %216 = vmatpush1.msra.mxu0 0.0
    %217 = vmatprep.subr.mxu0 0.0
    %218 = vmatpush1.msra.mxu0 0.0
    %219 = vmatprep.subr.mxu0 0.0
    %220 = vmatpush1.msra.mxu0 0.0
    %221 = vmatprep.subr.mxu0 0.0
    %222 = vmatpush1.msra.mxu0 0.0
    %223 = vmatprep.subr.mxu0 0.0
    %224 = vmatpush1.msra.mxu0 0.0
    %225 = vmatprep.subr.mxu0 0.0
    %226 = vmatpush1.msra.mxu0 0.0
    %227 = vmatprep.subr.mxu0 0.0
    %228 = vmatpush1.msra.mxu0 0.0
    %229 = vmatprep.subr.mxu0 0.0
    %230 = vmatpush1.msra.mxu0 0.0
    %231 = vmatprep.subr.mxu0 0.0
    %232 = vmatpush1.msra.mxu0 0.0
    %233 = vmatprep.subr.mxu0 0.0
    %234 = vmatpush1.msra.mxu0 0.0
    %235 = vmatprep.subr.mxu0 0.0
    %236 = vmatpush1.msra.mxu0 0.0
    %237 = vmatprep.subr.mxu0 0.0
    %238 = vmatpush1.msra.mxu0 0.0
    %239 = vmatprep.subr.mxu0 0.0
    %240 = vmatpush1.msra.mxu0 0.0
    %241 = vmatprep.mubr.f32.mxu0 0.0
    %242 = vmatmul.mubr.f32.gmra.mrb[0].mxu0 %v154
    %v243 = vpop.f32.mrb[0].mxu0
    %v244 = vadd.f32 %v150, %v243
    %v245 = vpop.f32.mrb[0].mxu0
    %246 = vmatprep.mubr.f32.mxu0 0.0
    %247 = vmatmul.mubr.f32.gmra.mrb[0].mxu0 %v157
    %v248 = vpop.f32.mrb[0].mxu0
    %v249 = vadd.f32 %v150, %v248
    %v250 = vpop.f32.mrb[0].mxu0
    %251 = vmatprep.mubr.f32.mxu0 0.0
    %252 = vmatmul.mubr.f32.gmra.mrb[0].mxu0 %v160
    %v253 = vpop.f32.mrb[0].mxu0
    %v254 = vadd.f32 %v150, %v253
    %v255 = vpop.f32.mrb[0].mxu0
    %256 = vmatprep.mubr.f32.mxu0 0.0
    %257 = vmatmul.mubr.f32.gmra.mrb[0].mxu0 %v163
    %v258 = vpop.f32.mrb[0].mxu0
    %v259 = vadd.f32 %v150, %v258
    %v260 = vpop.f32.mrb[0].mxu0
    %261 = vmatprep.mubr.f32.mxu0 0.0
    %262 = vmatmul.mubr.f32.gmra.mrb[0].mxu0 %v166
    %v263 = vpop.f32.mrb[0].mxu0
    %v264 = vadd.f32 %v150, %v263
    %v265 = vpop.f32.mrb[0].mxu0
    %266 = vmatprep.mubr.f32.mxu0 0.0
    %267 = vmatmul.mubr.f32.gmra.mrb[0].mxu0 %v169
    %v268 = vpop.f32.mrb[0].mxu0
    %v269 = vadd.f32 %v150, %v268
    %v270 = vpop.f32.mrb[0].mxu0
    %271 = vmatprep.mubr.f32.mxu0 0.0
    %272 = vmatmul.mubr.f32.gmra.mrb[0].mxu0 %v172
    %v273 = vpop.f32.mrb[0].mxu0
    %v274 = vadd.f32 %v150, %v273
    %v275 = vpop.f32.mrb[0].mxu0
    %276 = vmatprep.mubr.f32.mxu0 0.0
    %277 = vmatmul.mubr.f32.gmra.mrb[0].mxu0 %v175
    %v278 = vpop.f32.mrb[0].mxu0
    %v279 = vadd.f32 %v150, %v278
    %v280 = vpop.f32.mrb[0].mxu0
    %281 = vdwg.mxu0
    %282 = vst [vmem:[#allocation2] sm:$0xff] %v244
    %283 = vst [vmem:[#allocation2 + $0x8] sm:$0xff] %v249
    %284 = vst [vmem:[#allocation2 + $0x10] sm:$0xff] %v254
    %285 = vst [vmem:[#allocation2 + $0x18] sm:$0xff] %v259
    %286 = vst [vmem:[#allocation2 + $0x20] sm:$0xff] %v264
    %287 = vst [vmem:[#allocation2 + $0x28] sm:$0xff] %v269
    %288 = vst [vmem:[#allocation2 + $0x30] sm:$0xff] %v274
    %289 = vst [vmem:[#allocation2 + $0x38] sm:$0xff] %v279
    %v290 = vld [vmem:[#allocation9] sm:$0xff]
    %v291 = vld [vmem:[#allocation9 + $0x8] sm:$0xff]
    %v292 = vld [vmem:[#allocation9 + $0x10] sm:$0xff]
    %v293 = vld [vmem:[#allocation9 + $0x18] sm:$0xff]
    %v294 = vld [vmem:[#allocation2] sm:$0xff]
    %vm295 = vcmask 261120
    %v297 = vsel %vm295, 0.0, 0
    %299 = vmatprep.subr.mxu0 0.0
    %300 = vmatpush1.msra.mxu0 %v290
    %301 = vmatprep.subr.mxu0 0.0
    %302 = vmatpush1.msra.mxu0 %v291
    %303 = vmatprep.subr.mxu0 0.0
    %304 = vmatpush1.msra.mxu0 %v292
    %305 = vmatprep.subr.mxu0 0.0
    %306 = vmatpush1.msra.mxu0 %v293
    %307 = vmatprep.subr.mxu0 0.0
    %308 = vmatpush1.msra.mxu0 0.0
    %309 = vmatprep.subr.mxu0 0.0
    %310 = vmatpush1.msra.mxu0 0.0
    %311 = vmatprep.subr.mxu0 0.0
    %312 = vmatpush1.msra.mxu0 0.0
    %313 = vmatprep.subr.mxu0 0.0
    %314 = vmatpush1.msra.mxu0 0.0
    %315 = vmatprep.subr.mxu0 0.0
    %316 = vmatpush1.msra.mxu0 0.0
    %317 = vmatprep.subr.mxu0 0.0
    %318 = vmatpush1.msra.mxu0 0.0
    %319 = vmatprep.subr.mxu0 0.0
    %320 = vmatpush1.msra.mxu0 0.0
    %321 = vmatprep.subr.mxu0 0.0
    %322 = vmatpush1.msra.mxu0 0.0
    %323 = vmatprep.subr.mxu0 0.0
    %324 = vmatpush1.msra.mxu0 0.0
    %325 = vmatprep.subr.mxu0 0.0
    %326 = vmatpush1.msra.mxu0 0.0
    %327 = vmatprep.subr.mxu0 0.0
    %328 = vmatpush1.msra.mxu0 0.0
    %329 = vmatprep.subr.mxu0 0.0
    %330 = vmatpush1.msra.mxu0 0.0
    %331 = vmatprep.subr.mxu0 0.0
    %332 = vmatpush1.msra.mxu0 0.0
    %333 = vmatprep.subr.mxu0 0.0
    %334 = vmatpush1.msra.mxu0 0.0
    %335 = vmatprep.subr.mxu0 0.0
    %336 = vmatpush1.msra.mxu0 0.0
    %337 = vmatprep.subr.mxu0 0.0
    %338 = vmatpush1.msra.mxu0 0.0
    %339 = vmatprep.subr.mxu0 0.0
    %340 = vmatpush1.msra.mxu0 0.0
    %341 = vmatprep.subr.mxu0 0.0
    %342 = vmatpush1.msra.mxu0 0.0
    %343 = vmatprep.subr.mxu0 0.0
    %344 = vmatpush1.msra.mxu0 0.0
    %345 = vmatprep.subr.mxu0 0.0
    %346 = vmatpush1.msra.mxu0 0.0
    %347 = vmatprep.subr.mxu0 0.0
    %348 = vmatpush1.msra.mxu0 0.0
    %349 = vmatprep.subr.mxu0 0.0
    %350 = vmatpush1.msra.mxu0 0.0
    %351 = vmatprep.subr.mxu0 0.0
    %352 = vmatpush1.msra.mxu0 0.0
    %353 = vmatprep.subr.mxu0 0.0
    %354 = vmatpush1.msra.mxu0 0.0
    %355 = vmatprep.subr.mxu0 0.0
    %356 = vmatpush1.msra.mxu0 0.0
    %357 = vmatprep.subr.mxu0 0.0
    %358 = vmatpush1.msra.mxu0 0.0
    %359 = vmatprep.subr.mxu0 0.0
    %360 = vmatpush1.msra.mxu0 0.0
    %361 = vmatprep.subr.mxu0 0.0
    %362 = vmatpush1.msra.mxu0 0.0
    %363 = vmatprep.mubr.f32.mxu0 0.0
    %364 = vmatmul.mubr.f32.gmra.mrb[0].mxu0 %v297
    %v365 = vpop.f32.mrb[0].mxu0
    %v366 = vadd.f32 0.0, %v365
    %v367 = vpop.f32.mrb[0].mxu0
    %368 = vdwg.mxu0
    %v369 = vadd.f32 %v294, %v366
    %v370 = vxor.u32 %v369, 2147483648
    %v371 = vmul.f32 %v370, 1.442695
    %v372 = vpow.pop %v371
    %v373 = vadd.f32 %v372, 1.0
    %v374 = vrcp.pop %v373
    %v375 = vmul.f32 1.0, %v374
    %v376 = vtanh.pop %v369
    %v377 = vmul.f32 %v375, 0.0
    %379 = vrot.lane.b32.xlu0 %v376, 32
    %v380 = vpop.permute.xlu0 %379
    %v382 = vmul.f32 %v375, %v380
    %384 = vrot.lane.b32.xlu0 %v382, 32
    %v385 = vpop.permute.xlu0 %384
    %v387 = vadd.f32 %v377, %v385
    %v388 = vtanh.pop %v387
    %390 = vrot.lane.b32.xlu0 %v388, 32
    %v391 = vpop.permute.xlu0 %390
    %v393 = vmul.f32 %v375, %v391
    %s394 = scalar_lea.vmem [#allocation2], 8
    %v395 = vld [vmem:[%s394] sm:$0xff]
    %397 = vrot.lane.b32.xlu0 %v393, 64
    %v398 = vpop.permute.xlu0 %397
    %v399 = vsel %vm295, %v398, 0
    %401 = vmatprep.subr.mxu0 0.0
    %402 = vmatpush1.msra.mxu0 %v290
    %403 = vmatprep.subr.mxu0 0.0
    %404 = vmatpush1.msra.mxu0 %v291
    %405 = vmatprep.subr.mxu0 0.0
    %406 = vmatpush1.msra.mxu0 %v292
    %407 = vmatprep.subr.mxu0 0.0
    %408 = vmatpush1.msra.mxu0 %v293
    %409 = vmatprep.subr.mxu0 0.0
    %410 = vmatpush1.msra.mxu0 0.0
    %411 = vmatprep.subr.mxu0 0.0
    %412 = vmatpush1.msra.mxu0 0.0
    %413 = vmatprep.subr.mxu0 0.0
    %414 = vmatpush1.msra.mxu0 0.0
    %415 = vmatprep.subr.mxu0 0.0
    %416 = vmatpush1.msra.mxu0 0.0
    %417 = vmatprep.subr.mxu0 0.0
    %418 = vmatpush1.msra.mxu0 0.0
    %419 = vmatprep.subr.mxu0 0.0
    %420 = vmatpush1.msra.mxu0 0.0
    %421 = vmatprep.subr.mxu0 0.0
    %422 = vmatpush1.msra.mxu0 0.0
    %423 = vmatprep.subr.mxu0 0.0
    %424 = vmatpush1.msra.mxu0 0.0
    %425 = vmatprep.subr.mxu0 0.0
    %426 = vmatpush1.msra.mxu0 0.0
    %427 = vmatprep.subr.mxu0 0.0
    %428 = vmatpush1.msra.mxu0 0.0
    %429 = vmatprep.subr.mxu0 0.0
    %430 = vmatpush1.msra.mxu0 0.0
    %431 = vmatprep.subr.mxu0 0.0
    %432 = vmatpush1.msra.mxu0 0.0
    %433 = vmatprep.subr.mxu0 0.0
    %434 = vmatpush1.msra.mxu0 0.0
    %435 = vmatprep.subr.mxu0 0.0
    %436 = vmatpush1.msra.mxu0 0.0
    %437 = vmatprep.subr.mxu0 0.0
    %438 = vmatpush1.msra.mxu0 0.0
    %439 = vmatprep.subr.mxu0 0.0
    %440 = vmatpush1.msra.mxu0 0.0
    %441 = vmatprep.subr.mxu0 0.0
    %442 = vmatpush1.msra.mxu0 0.0
    %443 = vmatprep.subr.mxu0 0.0
    %444 = vmatpush1.msra.mxu0 0.0
    %445 = vmatprep.subr.mxu0 0.0
    %446 = vmatpush1.msra.mxu0 0.0
    %447 = vmatprep.subr.mxu0 0.0
    %448 = vmatpush1.msra.mxu0 0.0
    %449 = vmatprep.subr.mxu0 0.0
    %450 = vmatpush1.msra.mxu0 0.0
    %451 = vmatprep.subr.mxu0 0.0
    %452 = vmatpush1.msra.mxu0 0.0
    %453 = vmatprep.subr.mxu0 0.0
    %454 = vmatpush1.msra.mxu0 0.0
    %455 = vmatprep.subr.mxu0 0.0
    %456 = vmatpush1.msra.mxu0 0.0
    %457 = vmatprep.subr.mxu0 0.0
    %458 = vmatpush1.msra.mxu0 0.0
    %459 = vmatprep.subr.mxu0 0.0
    %460 = vmatpush1.msra.mxu0 0.0
    %461 = vmatprep.subr.mxu0 0.0
    %462 = vmatpush1.msra.mxu0 0.0
    %463 = vmatprep.subr.mxu0 0.0
    %464 = vmatpush1.msra.mxu0 0.0
    %465 = vmatprep.mubr.f32.mxu0 0.0
    %466 = vmatmul.mubr.f32.gmra.mrb[0].mxu0 %v399
    %v467 = vpop.f32.mrb[0].mxu0
    %v468 = vadd.f32 0.0, %v467
    %v469 = vpop.f32.mrb[0].mxu0
    %470 = vdwg.mxu0
    %v471 = vadd.f32 %v395, %v468
    %v472 = vxor.u32 %v471, 2147483648
    %v473 = vmul.f32 %v472, 1.442695
    %v474 = vpow.pop %v473
    %v475 = vadd.f32 %v474, 1.0
    %v476 = vrcp.pop %v475
    %v477 = vmul.f32 1.0, %v476
    %v478 = vtanh.pop %v471
    %v479 = vmul.f32 %v477, %v387
    %481 = vrot.lane.b32.xlu0 %v478, 32
    %v482 = vpop.permute.xlu0 %481
    %v484 = vmul.f32 %v477, %v482
    %486 = vrot.lane.b32.xlu0 %v484, 32
    %v487 = vpop.permute.xlu0 %486
    %v489 = vadd.f32 %v479, %v487
    %v490 = vtanh.pop %v489
    %492 = vrot.lane.b32.xlu0 %v490, 32
    %v493 = vpop.permute.xlu0 %492
    %v495 = vmul.f32 %v477, %v493
    %s496 = scalar_lea.vmem [#allocation2], 16
    %v497 = vld [vmem:[%s496] sm:$0xff]
    %499 = vrot.lane.b32.xlu0 %v495, 64
    %v500 = vpop.permute.xlu0 %499
    %v501 = vsel %vm295, %v500, 0
    %503 = vmatprep.subr.mxu0 0.0
    %504 = vmatpush1.msra.mxu0 %v290
    %505 = vmatprep.subr.mxu0 0.0
    %506 = vmatpush1.msra.mxu0 %v291
    %507 = vmatprep.subr.mxu0 0.0
    %508 = vmatpush1.msra.mxu0 %v292
    %509 = vmatprep.subr.mxu0 0.0
    %510 = vmatpush1.msra.mxu0 %v293
    %511 = vmatprep.subr.mxu0 0.0
    %512 = vmatpush1.msra.mxu0 0.0
    %513 = vmatprep.subr.mxu0 0.0
    %514 = vmatpush1.msra.mxu0 0.0
    %515 = vmatprep.subr.mxu0 0.0
    %516 = vmatpush1.msra.mxu0 0.0
    %517 = vmatprep.subr.mxu0 0.0
    %518 = vmatpush1.msra.mxu0 0.0
    %519 = vmatprep.subr.mxu0 0.0
    %520 = vmatpush1.msra.mxu0 0.0
    %521 = vmatprep.subr.mxu0 0.0
    %522 = vmatpush1.msra.mxu0 0.0
    %523 = vmatprep.subr.mxu0 0.0
    %524 = vmatpush1.msra.mxu0 0.0
    %525 = vmatprep.subr.mxu0 0.0
    %526 = vmatpush1.msra.mxu0 0.0
    %527 = vmatprep.subr.mxu0 0.0
    %528 = vmatpush1.msra.mxu0 0.0
    %529 = vmatprep.subr.mxu0 0.0
    %530 = vmatpush1.msra.mxu0 0.0
    %531 = vmatprep.subr.mxu0 0.0
    %532 = vmatpush1.msra.mxu0 0.0
    %533 = vmatprep.subr.mxu0 0.0
    %534 = vmatpush1.msra.mxu0 0.0
    %535 = vmatprep.subr.mxu0 0.0
    %536 = vmatpush1.msra.mxu0 0.0
    %537 = vmatprep.subr.mxu0 0.0
    %538 = vmatpush1.msra.mxu0 0.0
    %539 = vmatprep.subr.mxu0 0.0
    %540 = vmatpush1.msra.mxu0 0.0
    %541 = vmatprep.subr.mxu0 0.0
    %542 = vmatpush1.msra.mxu0 0.0
    %543 = vmatprep.subr.mxu0 0.0
    %544 = vmatpush1.msra.mxu0 0.0
    %545 = vmatprep.subr.mxu0 0.0
    %546 = vmatpush1.msra.mxu0 0.0
    %547 = vmatprep.subr.mxu0 0.0
    %548 = vmatpush1.msra.mxu0 0.0
    %549 = vmatprep.subr.mxu0 0.0
    %550 = vmatpush1.msra.mxu0 0.0
    %551 = vmatprep.subr.mxu0 0.0
    %552 = vmatpush1.msra.mxu0 0.0
    %553 = vmatprep.subr.mxu0 0.0
    %554 = vmatpush1.msra.mxu0 0.0
    %555 = vmatprep.subr.mxu0 0.0
    %556 = vmatpush1.msra.mxu0 0.0
    %557 = vmatprep.subr.mxu0 0.0
    %558 = vmatpush1.msra.mxu0 0.0
    %559 = vmatprep.subr.mxu0 0.0
    %560 = vmatpush1.msra.mxu0 0.0
    %561 = vmatprep.subr.mxu0 0.0
    %562 = vmatpush1.msra.mxu0 0.0
    %563 = vmatprep.subr.mxu0 0.0
    %564 = vmatpush1.msra.mxu0 0.0
    %565 = vmatprep.subr.mxu0 0.0
    %566 = vmatpush1.msra.mxu0 0.0
    %567 = vmatprep.mubr.f32.mxu0 0.0
    %568 = vmatmul.mubr.f32.gmra.mrb[0].mxu0 %v501
    %v569 = vpop.f32.mrb[0].mxu0
    %v570 = vadd.f32 0.0, %v569
    %v571 = vpop.f32.mrb[0].mxu0
    %572 = vdwg.mxu0
    %v573 = vadd.f32 %v497, %v570
    %v574 = vxor.u32 %v573, 2147483648
    %v575 = vmul.f32 %v574, 1.442695
    %v576 = vpow.pop %v575
    %v577 = vadd.f32 %v576, 1.0
    %v578 = vrcp.pop %v577
    %v579 = vmul.f32 1.0, %v578
    %v580 = vtanh.pop %v573
    %v581 = vmul.f32 %v579, %v489
    %583 = vrot.lane.b32.xlu0 %v580, 32
    %v584 = vpop.permute.xlu0 %583
    %v586 = vmul.f32 %v579, %v584
    %588 = vrot.lane.b32.xlu0 %v586, 32
    %v589 = vpop.permute.xlu0 %588
    %v591 = vadd.f32 %v581, %v589
    %v592 = vtanh.pop %v591
    %594 = vrot.lane.b32.xlu0 %v592, 32
    %v595 = vpop.permute.xlu0 %594
    %v597 = vmul.f32 %v579, %v595
    %s598 = scalar_lea.vmem [#allocation2], 24
    %v599 = vld [vmem:[%s598] sm:$0xff]
    %601 = vrot.lane.b32.xlu0 %v597, 64
    %v602 = vpop.permute.xlu0 %601
    %v603 = vsel %vm295, %v602, 0
    %605 = vmatprep.subr.mxu0 0.0
    %606 = vmatpush1.msra.mxu0 %v290
    %607 = vmatprep.subr.mxu0 0.0
    %608 = vmatpush1.msra.mxu0 %v291
    %609 = vmatprep.subr.mxu0 0.0
    %610 = vmatpush1.msra.mxu0 %v292
    %611 = vmatprep.subr.mxu0 0.0
    %612 = vmatpush1.msra.mxu0 %v293
    %613 = vmatprep.subr.mxu0 0.0
    %614 = vmatpush1.msra.mxu0 0.0
    %615 = vmatprep.subr.mxu0 0.0
    %616 = vmatpush1.msra.mxu0 0.0
    %617 = vmatprep.subr.mxu0 0.0
    %618 = vmatpush1.msra.mxu0 0.0
    %619 = vmatprep.subr.mxu0 0.0
    %620 = vmatpush1.msra.mxu0 0.0
    %621 = vmatprep.subr.mxu0 0.0
    %622 = vmatpush1.msra.mxu0 0.0
    %623 = vmatprep.subr.mxu0 0.0
    %624 = vmatpush1.msra.mxu0 0.0
    %625 = vmatprep.subr.mxu0 0.0
    %626 = vmatpush1.msra.mxu0 0.0
    %627 = vmatprep.subr.mxu0 0.0
    %628 = vmatpush1.msra.mxu0 0.0
    %629 = vmatprep.subr.mxu0 0.0
    %630 = vmatpush1.msra.mxu0 0.0
    %631 = vmatprep.subr.mxu0 0.0
    %632 = vmatpush1.msra.mxu0 0.0
    %633 = vmatprep.subr.mxu0 0.0
    %634 = vmatpush1.msra.mxu0 0.0
    %635 = vmatprep.subr.mxu0 0.0
    %636 = vmatpush1.msra.mxu0 0.0
    %637 = vmatprep.subr.mxu0 0.0
    %638 = vmatpush1.msra.mxu0 0.0
    %639 = vmatprep.subr.mxu0 0.0
    %640 = vmatpush1.msra.mxu0 0.0
    %641 = vmatprep.subr.mxu0 0.0
    %642 = vmatpush1.msra.mxu0 0.0
    %643 = vmatprep.subr.mxu0 0.0
    %644 = vmatpush1.msra.mxu0 0.0
    %645 = vmatprep.subr.mxu0 0.0
    %646 = vmatpush1.msra.mxu0 0.0
    %647 = vmatprep.subr.mxu0 0.0
    %648 = vmatpush1.msra.mxu0 0.0
    %649 = vmatprep.subr.mxu0 0.0
    %650 = vmatpush1.msra.mxu0 0.0
    %651 = vmatprep.subr.mxu0 0.0
    %652 = vmatpush1.msra.mxu0 0.0
    %653 = vmatprep.subr.mxu0 0.0
    %654 = vmatpush1.msra.mxu0 0.0
    %655 = vmatprep.subr.mxu0 0.0
    %656 = vmatpush1.msra.mxu0 0.0
    %657 = vmatprep.subr.mxu0 0.0
    %658 = vmatpush1.msra.mxu0 0.0
    %659 = vmatprep.subr.mxu0 0.0
    %660 = vmatpush1.msra.mxu0 0.0
    %661 = vmatprep.subr.mxu0 0.0
    %662 = vmatpush1.msra.mxu0 0.0
    %663 = vmatprep.subr.mxu0 0.0
    %664 = vmatpush1.msra.mxu0 0.0
    %665 = vmatprep.subr.mxu0 0.0
    %666 = vmatpush1.msra.mxu0 0.0
    %667 = vmatprep.subr.mxu0 0.0
    %668 = vmatpush1.msra.mxu0 0.0
    %669 = vmatprep.mubr.f32.mxu0 0.0
    %670 = vmatmul.mubr.f32.gmra.mrb[0].mxu0 %v603
    %v671 = vpop.f32.mrb[0].mxu0
    %v672 = vadd.f32 0.0, %v671
    %v673 = vpop.f32.mrb[0].mxu0
    %674 = vdwg.mxu0
    %v675 = vadd.f32 %v599, %v672
    %v676 = vxor.u32 %v675, 2147483648
    %v677 = vmul.f32 %v676, 1.442695
    %v678 = vpow.pop %v677
    %v679 = vadd.f32 %v678, 1.0
    %v680 = vrcp.pop %v679
    %v681 = vmul.f32 1.0, %v680
    %v682 = vtanh.pop %v675
    %v683 = vmul.f32 %v681, %v591
    %685 = vrot.lane.b32.xlu0 %v682, 32
    %v686 = vpop.permute.xlu0 %685
    %v688 = vmul.f32 %v681, %v686
    %690 = vrot.lane.b32.xlu0 %v688, 32
    %v691 = vpop.permute.xlu0 %690
    %v693 = vadd.f32 %v683, %v691
    %v694 = vtanh.pop %v693
    %696 = vrot.lane.b32.xlu0 %v694, 32
    %v697 = vpop.permute.xlu0 %696
    %v699 = vmul.f32 %v681, %v697
    %s700 = scalar_lea.vmem [#allocation2], 32
    %v701 = vld [vmem:[%s700] sm:$0xff]
    %703 = vrot.lane.b32.xlu0 %v699, 64
    %v704 = vpop.permute.xlu0 %703
    %v705 = vsel %vm295, %v704, 0
    %707 = vmatprep.subr.mxu0 0.0
    %708 = vmatpush1.msra.mxu0 %v290
    %709 = vmatprep.subr.mxu0 0.0
    %710 = vmatpush1.msra.mxu0 %v291
    %711 = vmatprep.subr.mxu0 0.0
    %712 = vmatpush1.msra.mxu0 %v292
    %713 = vmatprep.subr.mxu0 0.0
    %714 = vmatpush1.msra.mxu0 %v293
    %715 = vmatprep.subr.mxu0 0.0
    %716 = vmatpush1.msra.mxu0 0.0
    %717 = vmatprep.subr.mxu0 0.0
    %718 = vmatpush1.msra.mxu0 0.0
    %719 = vmatprep.subr.mxu0 0.0
    %720 = vmatpush1.msra.mxu0 0.0
    %721 = vmatprep.subr.mxu0 0.0
    %722 = vmatpush1.msra.mxu0 0.0
    %723 = vmatprep.subr.mxu0 0.0
    %724 = vmatpush1.msra.mxu0 0.0
    %725 = vmatprep.subr.mxu0 0.0
    %726 = vmatpush1.msra.mxu0 0.0
    %727 = vmatprep.subr.mxu0 0.0
    %728 = vmatpush1.msra.mxu0 0.0
    %729 = vmatprep.subr.mxu0 0.0
    %730 = vmatpush1.msra.mxu0 0.0
    %731 = vmatprep.subr.mxu0 0.0
    %732 = vmatpush1.msra.mxu0 0.0
    %733 = vmatprep.subr.mxu0 0.0
    %734 = vmatpush1.msra.mxu0 0.0
    %735 = vmatprep.subr.mxu0 0.0
    %736 = vmatpush1.msra.mxu0 0.0
    %737 = vmatprep.subr.mxu0 0.0
    %738 = vmatpush1.msra.mxu0 0.0
    %739 = vmatprep.subr.mxu0 0.0
    %740 = vmatpush1.msra.mxu0 0.0
    %741 = vmatprep.subr.mxu0 0.0
    %742 = vmatpush1.msra.mxu0 0.0
    %743 = vmatprep.subr.mxu0 0.0
    %744 = vmatpush1.msra.mxu0 0.0
    %745 = vmatprep.subr.mxu0 0.0
    %746 = vmatpush1.msra.mxu0 0.0
    %747 = vmatprep.subr.mxu0 0.0
    %748 = vmatpush1.msra.mxu0 0.0
    %749 = vmatprep.subr.mxu0 0.0
    %750 = vmatpush1.msra.mxu0 0.0
    %751 = vmatprep.subr.mxu0 0.0
    %752 = vmatpush1.msra.mxu0 0.0
    %753 = vmatprep.subr.mxu0 0.0
    %754 = vmatpush1.msra.mxu0 0.0
    %755 = vmatprep.subr.mxu0 0.0
    %756 = vmatpush1.msra.mxu0 0.0
    %757 = vmatprep.subr.mxu0 0.0
    %758 = vmatpush1.msra.mxu0 0.0
    %759 = vmatprep.subr.mxu0 0.0
    %760 = vmatpush1.msra.mxu0 0.0
    %761 = vmatprep.subr.mxu0 0.0
    %762 = vmatpush1.msra.mxu0 0.0
    %763 = vmatprep.subr.mxu0 0.0
    %764 = vmatpush1.msra.mxu0 0.0
    %765 = vmatprep.subr.mxu0 0.0
    %766 = vmatpush1.msra.mxu0 0.0
    %767 = vmatprep.subr.mxu0 0.0
    %768 = vmatpush1.msra.mxu0 0.0
    %769 = vmatprep.subr.mxu0 0.0
    %770 = vmatpush1.msra.mxu0 0.0
    %771 = vmatprep.mubr.f32.mxu0 0.0
    %772 = vmatmul.mubr.f32.gmra.mrb[0].mxu0 %v705
    %v773 = vpop.f32.mrb[0].mxu0
    %v774 = vadd.f32 0.0, %v773
    %v775 = vpop.f32.mrb[0].mxu0
    %776 = vdwg.mxu0
    %v777 = vadd.f32 %v701, %v774
    %v778 = vxor.u32 %v777, 2147483648
    %v779 = vmul.f32 %v778, 1.442695
    %v780 = vpow.pop %v779
    %v781 = vadd.f32 %v780, 1.0
    %v782 = vrcp.pop %v781
    %v783 = vmul.f32 1.0, %v782
    %v784 = vtanh.pop %v777
    %v785 = vmul.f32 %v783, %v693
    %787 = vrot.lane.b32.xlu0 %v784, 32
    %v788 = vpop.permute.xlu0 %787
    %v790 = vmul.f32 %v783, %v788
    %792 = vrot.lane.b32.xlu0 %v790, 32
    %v793 = vpop.permute.xlu0 %792
    %v795 = vadd.f32 %v785, %v793
    %v796 = vtanh.pop %v795
    %798 = vrot.lane.b32.xlu0 %v796, 32
    %v799 = vpop.permute.xlu0 %798
    %v801 = vmul.f32 %v783, %v799
    %s802 = scalar_lea.vmem [#allocation2], 40
    %v803 = vld [vmem:[%s802] sm:$0xff]
    %805 = vrot.lane.b32.xlu0 %v801, 64
    %v806 = vpop.permute.xlu0 %805
    %v807 = vsel %vm295, %v806, 0
    %809 = vmatprep.subr.mxu0 0.0
    %810 = vmatpush1.msra.mxu0 %v290
    %811 = vmatprep.subr.mxu0 0.0
    %812 = vmatpush1.msra.mxu0 %v291
    %813 = vmatprep.subr.mxu0 0.0
    %814 = vmatpush1.msra.mxu0 %v292
    %815 = vmatprep.subr.mxu0 0.0
    %816 = vmatpush1.msra.mxu0 %v293
    %817 = vmatprep.subr.mxu0 0.0
    %818 = vmatpush1.msra.mxu0 0.0
    %819 = vmatprep.subr.mxu0 0.0
    %820 = vmatpush1.msra.mxu0 0.0
    %821 = vmatprep.subr.mxu0 0.0
    %822 = vmatpush1.msra.mxu0 0.0
    %823 = vmatprep.subr.mxu0 0.0
    %824 = vmatpush1.msra.mxu0 0.0
    %825 = vmatprep.subr.mxu0 0.0
    %826 = vmatpush1.msra.mxu0 0.0
    %827 = vmatprep.subr.mxu0 0.0
    %828 = vmatpush1.msra.mxu0 0.0
    %829 = vmatprep.subr.mxu0 0.0
    %830 = vmatpush1.msra.mxu0 0.0
    %831 = vmatprep.subr.mxu0 0.0
    %832 = vmatpush1.msra.mxu0 0.0
    %833 = vmatprep.subr.mxu0 0.0
    %834 = vmatpush1.msra.mxu0 0.0
    %835 = vmatprep.subr.mxu0 0.0
    %836 = vmatpush1.msra.mxu0 0.0
    %837 = vmatprep.subr.mxu0 0.0
    %838 = vmatpush1.msra.mxu0 0.0
    %839 = vmatprep.subr.mxu0 0.0
    %840 = vmatpush1.msra.mxu0 0.0
    %841 = vmatprep.subr.mxu0 0.0
    %842 = vmatpush1.msra.mxu0 0.0
    %843 = vmatprep.subr.mxu0 0.0
    %844 = vmatpush1.msra.mxu0 0.0
    %845 = vmatprep.subr.mxu0 0.0
    %846 = vmatpush1.msra.mxu0 0.0
    %847 = vmatprep.subr.mxu0 0.0
    %848 = vmatpush1.msra.mxu0 0.0
    %849 = vmatprep.subr.mxu0 0.0
    %850 = vmatpush1.msra.mxu0 0.0
    %851 = vmatprep.subr.mxu0 0.0
    %852 = vmatpush1.msra.mxu0 0.0
    %853 = vmatprep.subr.mxu0 0.0
    %854 = vmatpush1.msra.mxu0 0.0
    %855 = vmatprep.subr.mxu0 0.0
    %856 = vmatpush1.msra.mxu0 0.0
    %857 = vmatprep.subr.mxu0 0.0
    %858 = vmatpush1.msra.mxu0 0.0
    %859 = vmatprep.subr.mxu0 0.0
    %860 = vmatpush1.msra.mxu0 0.0
    %861 = vmatprep.subr.mxu0 0.0
    %862 = vmatpush1.msra.mxu0 0.0
    %863 = vmatprep.subr.mxu0 0.0
    %864 = vmatpush1.msra.mxu0 0.0
    %865 = vmatprep.subr.mxu0 0.0
    %866 = vmatpush1.msra.mxu0 0.0
    %867 = vmatprep.subr.mxu0 0.0
    %868 = vmatpush1.msra.mxu0 0.0
    %869 = vmatprep.subr.mxu0 0.0
    %870 = vmatpush1.msra.mxu0 0.0
    %871 = vmatprep.subr.mxu0 0.0
    %872 = vmatpush1.msra.mxu0 0.0
    %873 = vmatprep.mubr.f32.mxu0 0.0
    %874 = vmatmul.mubr.f32.gmra.mrb[0].mxu0 %v807
    %v875 = vpop.f32.mrb[0].mxu0
    %v876 = vadd.f32 0.0, %v875
    %v877 = vpop.f32.mrb[0].mxu0
    %878 = vdwg.mxu0
    %v879 = vadd.f32 %v803, %v876
    %v880 = vxor.u32 %v879, 2147483648
    %v881 = vmul.f32 %v880, 1.442695
    %v882 = vpow.pop %v881
    %v883 = vadd.f32 %v882, 1.0
    %v884 = vrcp.pop %v883
    %v885 = vmul.f32 1.0, %v884
    %v886 = vtanh.pop %v879
    %v887 = vmul.f32 %v885, %v795
    %889 = vrot.lane.b32.xlu0 %v886, 32
    %v890 = vpop.permute.xlu0 %889
    %v892 = vmul.f32 %v885, %v890
    %894 = vrot.lane.b32.xlu0 %v892, 32
    %v895 = vpop.permute.xlu0 %894
    %v897 = vadd.f32 %v887, %v895
    %v898 = vtanh.pop %v897
    %900 = vrot.lane.b32.xlu0 %v898, 32
    %v901 = vpop.permute.xlu0 %900
    %v903 = vmul.f32 %v885, %v901
    %s904 = scalar_lea.vmem [#allocation2], 48
    %v905 = vld [vmem:[%s904] sm:$0xff]
    %907 = vrot.lane.b32.xlu0 %v903, 64
    %v908 = vpop.permute.xlu0 %907
    %v909 = vsel %vm295, %v908, 0
    %911 = vmatprep.subr.mxu0 0.0
    %912 = vmatpush1.msra.mxu0 %v290
    %913 = vmatprep.subr.mxu0 0.0
    %914 = vmatpush1.msra.mxu0 %v291
    %915 = vmatprep.subr.mxu0 0.0
    %916 = vmatpush1.msra.mxu0 %v292
    %917 = vmatprep.subr.mxu0 0.0
    %918 = vmatpush1.msra.mxu0 %v293
    %919 = vmatprep.subr.mxu0 0.0
    %920 = vmatpush1.msra.mxu0 0.0
    %921 = vmatprep.subr.mxu0 0.0
    %922 = vmatpush1.msra.mxu0 0.0
    %923 = vmatprep.subr.mxu0 0.0
    %924 = vmatpush1.msra.mxu0 0.0
    %925 = vmatprep.subr.mxu0 0.0
    %926 = vmatpush1.msra.mxu0 0.0
    %927 = vmatprep.subr.mxu0 0.0
    %928 = vmatpush1.msra.mxu0 0.0
    %929 = vmatprep.subr.mxu0 0.0
    %930 = vmatpush1.msra.mxu0 0.0
    %931 = vmatprep.subr.mxu0 0.0
    %932 = vmatpush1.msra.mxu0 0.0
    %933 = vmatprep.subr.mxu0 0.0
    %934 = vmatpush1.msra.mxu0 0.0
    %935 = vmatprep.subr.mxu0 0.0
    %936 = vmatpush1.msra.mxu0 0.0
    %937 = vmatprep.subr.mxu0 0.0
    %938 = vmatpush1.msra.mxu0 0.0
    %939 = vmatprep.subr.mxu0 0.0
    %940 = vmatpush1.msra.mxu0 0.0
    %941 = vmatprep.subr.mxu0 0.0
    %942 = vmatpush1.msra.mxu0 0.0
    %943 = vmatprep.subr.mxu0 0.0
    %944 = vmatpush1.msra.mxu0 0.0
    %945 = vmatprep.subr.mxu0 0.0
    %946 = vmatpush1.msra.mxu0 0.0
    %947 = vmatprep.subr.mxu0 0.0
    %948 = vmatpush1.msra.mxu0 0.0
    %949 = vmatprep.subr.mxu0 0.0
    %950 = vmatpush1.msra.mxu0 0.0
    %951 = vmatprep.subr.mxu0 0.0
    %952 = vmatpush1.msra.mxu0 0.0
    %953 = vmatprep.subr.mxu0 0.0
    %954 = vmatpush1.msra.mxu0 0.0
    %955 = vmatprep.subr.mxu0 0.0
    %956 = vmatpush1.msra.mxu0 0.0
    %957 = vmatprep.subr.mxu0 0.0
    %958 = vmatpush1.msra.mxu0 0.0
    %959 = vmatprep.subr.mxu0 0.0
    %960 = vmatpush1.msra.mxu0 0.0
    %961 = vmatprep.subr.mxu0 0.0
    %962 = vmatpush1.msra.mxu0 0.0
    %963 = vmatprep.subr.mxu0 0.0
    %964 = vmatpush1.msra.mxu0 0.0
    %965 = vmatprep.subr.mxu0 0.0
    %966 = vmatpush1.msra.mxu0 0.0
    %967 = vmatprep.subr.mxu0 0.0
    %968 = vmatpush1.msra.mxu0 0.0
    %969 = vmatprep.subr.mxu0 0.0
    %970 = vmatpush1.msra.mxu0 0.0
    %971 = vmatprep.subr.mxu0 0.0
    %972 = vmatpush1.msra.mxu0 0.0
    %973 = vmatprep.subr.mxu0 0.0
    %974 = vmatpush1.msra.mxu0 0.0
    %975 = vmatprep.mubr.f32.mxu0 0.0
    %976 = vmatmul.mubr.f32.gmra.mrb[0].mxu0 %v909
    %v977 = vpop.f32.mrb[0].mxu0
    %v978 = vadd.f32 0.0, %v977
    %v979 = vpop.f32.mrb[0].mxu0
    %980 = vdwg.mxu0
    %v981 = vadd.f32 %v905, %v978
    %v982 = vxor.u32 %v981, 2147483648
    %v983 = vmul.f32 %v982, 1.442695
    %v984 = vpow.pop %v983
    %v985 = vadd.f32 %v984, 1.0
    %v986 = vrcp.pop %v985
    %v987 = vmul.f32 1.0, %v986
    %v988 = vtanh.pop %v981
    %v989 = vmul.f32 %v987, %v897
    %991 = vrot.lane.b32.xlu0 %v988, 32
    %v992 = vpop.permute.xlu0 %991
    %v994 = vmul.f32 %v987, %v992
    %996 = vrot.lane.b32.xlu0 %v994, 32
    %v997 = vpop.permute.xlu0 %996
    %v999 = vadd.f32 %v989, %v997
    %v1000 = vtanh.pop %v999
    %1002 = vrot.lane.b32.xlu0 %v1000, 32
    %v1003 = vpop.permute.xlu0 %1002
    %v1005 = vmul.f32 %v987, %v1003
    %s1006 = scalar_lea.vmem [#allocation2], 56
    %v1007 = vld [vmem:[%s1006] sm:$0xff]
    %1009 = vrot.lane.b32.xlu0 %v1005, 64
    %v1010 = vpop.permute.xlu0 %1009
    %v1011 = vsel %vm295, %v1010, 0
    %1013 = vmatprep.subr.mxu0 0.0
    %1014 = vmatpush1.msra.mxu0 %v290
    %1015 = vmatprep.subr.mxu0 0.0
    %1016 = vmatpush1.msra.mxu0 %v291
    %1017 = vmatprep.subr.mxu0 0.0
    %1018 = vmatpush1.msra.mxu0 %v292
    %1019 = vmatprep.subr.mxu0 0.0
    %1020 = vmatpush1.msra.mxu0 %v293
    %1021 = vmatprep.subr.mxu0 0.0
    %1022 = vmatpush1.msra.mxu0 0.0
    %1023 = vmatprep.subr.mxu0 0.0
    %1024 = vmatpush1.msra.mxu0 0.0
    %1025 = vmatprep.subr.mxu0 0.0
    %1026 = vmatpush1.msra.mxu0 0.0
    %1027 = vmatprep.subr.mxu0 0.0
    %1028 = vmatpush1.msra.mxu0 0.0
    %1029 = vmatprep.subr.mxu0 0.0
    %1030 = vmatpush1.msra.mxu0 0.0
    %1031 = vmatprep.subr.mxu0 0.0
    %1032 = vmatpush1.msra.mxu0 0.0
    %1033 = vmatprep.subr.mxu0 0.0
    %1034 = vmatpush1.msra.mxu0 0.0
    %1035 = vmatprep.subr.mxu0 0.0
    %1036 = vmatpush1.msra.mxu0 0.0
    %1037 = vmatprep.subr.mxu0 0.0
    %1038 = vmatpush1.msra.mxu0 0.0
    %1039 = vmatprep.subr.mxu0 0.0
    %1040 = vmatpush1.msra.mxu0 0.0
    %1041 = vmatprep.subr.mxu0 0.0
    %1042 = vmatpush1.msra.mxu0 0.0
    %1043 = vmatprep.subr.mxu0 0.0
    %1044 = vmatpush1.msra.mxu0 0.0
    %1045 = vmatprep.subr.mxu0 0.0
    %1046 = vmatpush1.msra.mxu0 0.0
    %1047 = vmatprep.subr.mxu0 0.0
    %1048 = vmatpush1.msra.mxu0 0.0
    %1049 = vmatprep.subr.mxu0 0.0
    %1050 = vmatpush1.msra.mxu0 0.0
    %1051 = vmatprep.subr.mxu0 0.0
    %1052 = vmatpush1.msra.mxu0 0.0
    %1053 = vmatprep.subr.mxu0 0.0
    %1054 = vmatpush1.msra.mxu0 0.0
    %1055 = vmatprep.subr.mxu0 0.0
    %1056 = vmatpush1.msra.mxu0 0.0
    %1057 = vmatprep.subr.mxu0 0.0
    %1058 = vmatpush1.msra.mxu0 0.0
    %1059 = vmatprep.subr.mxu0 0.0
    %1060 = vmatpush1.msra.mxu0 0.0
    %1061 = vmatprep.subr.mxu0 0.0
    %1062 = vmatpush1.msra.mxu0 0.0
    %1063 = vmatprep.subr.mxu0 0.0
    %1064 = vmatpush1.msra.mxu0 0.0
    %1065 = vmatprep.subr.mxu0 0.0
    %1066 = vmatpush1.msra.mxu0 0.0
    %1067 = vmatprep.subr.mxu0 0.0
    %1068 = vmatpush1.msra.mxu0 0.0
    %1069 = vmatprep.subr.mxu0 0.0
    %1070 = vmatpush1.msra.mxu0 0.0
    %1071 = vmatprep.subr.mxu0 0.0
    %1072 = vmatpush1.msra.mxu0 0.0
    %1073 = vmatprep.subr.mxu0 0.0
    %1074 = vmatpush1.msra.mxu0 0.0
    %1075 = vmatprep.subr.mxu0 0.0
    %1076 = vmatpush1.msra.mxu0 0.0
    %1077 = vmatprep.mubr.f32.mxu0 0.0
    %1078 = vmatmul.mubr.f32.gmra.mrb[0].mxu0 %v1011
    %v1079 = vpop.f32.mrb[0].mxu0
    %v1080 = vadd.f32 0.0, %v1079
    %v1081 = vpop.f32.mrb[0].mxu0
    %1082 = vdwg.mxu0
    %v1083 = vadd.f32 %v1007, %v1080
    %v1084 = vxor.u32 %v1083, 2147483648
    %v1085 = vmul.f32 %v1084, 1.442695
    %v1086 = vpow.pop %v1085
    %v1087 = vadd.f32 %v1086, 1.0
    %v1088 = vrcp.pop %v1087
    %v1089 = vmul.f32 1.0, %v1088
    %v1090 = vtanh.pop %v1083
    %v1091 = vmul.f32 %v1089, %v999
    %1093 = vrot.lane.b32.xlu0 %v1090, 32
    %v1094 = vpop.permute.xlu0 %1093
    %v1096 = vmul.f32 %v1089, %v1094
    %1098 = vrot.lane.b32.xlu0 %v1096, 32
    %v1099 = vpop.permute.xlu0 %1098
    %v1101 = vadd.f32 %v1091, %v1099
    %v1102 = vtanh.pop %v1101
    %1104 = vrot.lane.b32.xlu0 %v1102, 32
    %v1105 = vpop.permute.xlu0 %1104
    %v1107 = vmul.f32 %v1089, %v1105
    %v1108 = vld [vmem:[#allocation11] sm:$0xff]
    %v1109 = vld [vmem:[#allocation11 + $0x8] sm:$0xff]
    %v1110 = vld [vmem:[#allocation11 + $0x10] sm:$0xff]
    %v1111 = vld [vmem:[#allocation11 + $0x18] sm:$0xff]
    %v1112 = vld [vmem:[#allocation6] sm:$0xff]
    %v1113 = vld [vmem:[#allocation12] sm:$0xff]
    %v1114 = vld [vmem:[#allocation12 + $0x8] sm:$0xff]
    %v1115 = vld [vmem:[#allocation12 + $0x10] sm:$0xff]
    %v1116 = vld [vmem:[#allocation12 + $0x18] sm:$0xff]
    %v1118 = vsel %vm295, %v1112, 0
    %1120 = vmatprep.subr.mxu0 0.0
    %1121 = vmatpush1.msra.mxu0 %v1113
    %1122 = vmatprep.subr.mxu0 0.0
    %1123 = vmatpush1.msra.mxu0 %v1114
    %1124 = vmatprep.subr.mxu0 0.0
    %1125 = vmatpush1.msra.mxu0 %v1115
    %1126 = vmatprep.subr.mxu0 0.0
    %1127 = vmatpush1.msra.mxu0 %v1116
    %1128 = vmatprep.subr.mxu0 0.0
    %1129 = vmatpush1.msra.mxu0 0.0
    %1130 = vmatprep.subr.mxu0 0.0
    %1131 = vmatpush1.msra.mxu0 0.0
    %1132 = vmatprep.subr.mxu0 0.0
    %1133 = vmatpush1.msra.mxu0 0.0
    %1134 = vmatprep.subr.mxu0 0.0
    %1135 = vmatpush1.msra.mxu0 0.0
    %1136 = vmatprep.subr.mxu0 0.0
    %1137 = vmatpush1.msra.mxu0 0.0
    %1138 = vmatprep.subr.mxu0 0.0
    %1139 = vmatpush1.msra.mxu0 0.0
    %1140 = vmatprep.subr.mxu0 0.0
    %1141 = vmatpush1.msra.mxu0 0.0
    %1142 = vmatprep.subr.mxu0 0.0
    %1143 = vmatpush1.msra.mxu0 0.0
    %1144 = vmatprep.subr.mxu0 0.0
    %1145 = vmatpush1.msra.mxu0 0.0
    %1146 = vmatprep.subr.mxu0 0.0
    %1147 = vmatpush1.msra.mxu0 0.0
    %1148 = vmatprep.subr.mxu0 0.0
    %1149 = vmatpush1.msra.mxu0 0.0
    %1150 = vmatprep.subr.mxu0 0.0
    %1151 = vmatpush1.msra.mxu0 0.0
    %1152 = vmatprep.subr.mxu0 0.0
    %1153 = vmatpush1.msra.mxu0 0.0
    %1154 = vmatprep.subr.mxu0 0.0
    %1155 = vmatpush1.msra.mxu0 0.0
    %1156 = vmatprep.subr.mxu0 0.0
    %1157 = vmatpush1.msra.mxu0 0.0
    %1158 = vmatprep.subr.mxu0 0.0
    %1159 = vmatpush1.msra.mxu0 0.0
    %1160 = vmatprep.subr.mxu0 0.0
    %1161 = vmatpush1.msra.mxu0 0.0
    %1162 = vmatprep.subr.mxu0 0.0
    %1163 = vmatpush1.msra.mxu0 0.0
    %1164 = vmatprep.subr.mxu0 0.0
    %1165 = vmatpush1.msra.mxu0 0.0
    %1166 = vmatprep.subr.mxu0 0.0
    %1167 = vmatpush1.msra.mxu0 0.0
    %1168 = vmatprep.subr.mxu0 0.0
    %1169 = vmatpush1.msra.mxu0 0.0
    %1170 = vmatprep.subr.mxu0 0.0
    %1171 = vmatpush1.msra.mxu0 0.0
    %1172 = vmatprep.subr.mxu0 0.0
    %1173 = vmatpush1.msra.mxu0 0.0
    %1174 = vmatprep.subr.mxu0 0.0
    %1175 = vmatpush1.msra.mxu0 0.0
    %1176 = vmatprep.subr.mxu0 0.0
    %1177 = vmatpush1.msra.mxu0 0.0
    %1178 = vmatprep.subr.mxu0 0.0
    %1179 = vmatpush1.msra.mxu0 0.0
    %1180 = vmatprep.subr.mxu0 0.0
    %1181 = vmatpush1.msra.mxu0 0.0
    %1182 = vmatprep.subr.mxu0 0.0
    %1183 = vmatpush1.msra.mxu0 0.0
    %1184 = vmatprep.mubr.f32.mxu0 0.0
    %1185 = vmatmul.mubr.f32.gmra.mrb[0].mxu0 %v1118
    %v1186 = vpop.f32.mrb[0].mxu0
    %v1187 = vadd.f32 0.0, %v1186
    %v1188 = vpop.f32.mrb[0].mxu0
    %1189 = vdwg.mxu0
    %1191 = vrot.lane.b32.xlu0 %v1107, 64
    %v1192 = vpop.permute.xlu0 %1191
    %v1193 = vsel %vm295, %v1192, 0
    %1195 = vmatprep.subr.mxu0 0.0
    %1196 = vmatpush1.msra.mxu0 %v1108
    %1197 = vmatprep.subr.mxu0 0.0
    %1198 = vmatpush1.msra.mxu0 %v1109
    %1199 = vmatprep.subr.mxu0 0.0
    %1200 = vmatpush1.msra.mxu0 %v1110
    %1201 = vmatprep.subr.mxu0 0.0
    %1202 = vmatpush1.msra.mxu0 %v1111
    %1203 = vmatprep.subr.mxu0 0.0
    %1204 = vmatpush1.msra.mxu0 0.0
    %1205 = vmatprep.subr.mxu0 0.0
    %1206 = vmatpush1.msra.mxu0 0.0
    %1207 = vmatprep.subr.mxu0 0.0
    %1208 = vmatpush1.msra.mxu0 0.0
    %1209 = vmatprep.subr.mxu0 0.0
    %1210 = vmatpush1.msra.mxu0 0.0
    %1211 = vmatprep.subr.mxu0 0.0
    %1212 = vmatpush1.msra.mxu0 0.0
    %1213 = vmatprep.subr.mxu0 0.0
    %1214 = vmatpush1.msra.mxu0 0.0
    %1215 = vmatprep.subr.mxu0 0.0
    %1216 = vmatpush1.msra.mxu0 0.0
    %1217 = vmatprep.subr.mxu0 0.0
    %1218 = vmatpush1.msra.mxu0 0.0
    %1219 = vmatprep.subr.mxu0 0.0
    %1220 = vmatpush1.msra.mxu0 0.0
    %1221 = vmatprep.subr.mxu0 0.0
    %1222 = vmatpush1.msra.mxu0 0.0
    %1223 = vmatprep.subr.mxu0 0.0
    %1224 = vmatpush1.msra.mxu0 0.0
    %1225 = vmatprep.subr.mxu0 0.0
    %1226 = vmatpush1.msra.mxu0 0.0
    %1227 = vmatprep.subr.mxu0 0.0
    %1228 = vmatpush1.msra.mxu0 0.0
    %1229 = vmatprep.subr.mxu0 0.0
    %1230 = vmatpush1.msra.mxu0 0.0
    %1231 = vmatprep.subr.mxu0 0.0
    %1232 = vmatpush1.msra.mxu0 0.0
    %1233 = vmatprep.subr.mxu0 0.0
    %1234 = vmatpush1.msra.mxu0 0.0
    %1235 = vmatprep.subr.mxu0 0.0
    %1236 = vmatpush1.msra.mxu0 0.0
    %1237 = vmatprep.subr.mxu0 0.0
    %1238 = vmatpush1.msra.mxu0 0.0
    %1239 = vmatprep.subr.mxu0 0.0
    %1240 = vmatpush1.msra.mxu0 0.0
    %1241 = vmatprep.subr.mxu0 0.0
    %1242 = vmatpush1.msra.mxu0 0.0
    %1243 = vmatprep.subr.mxu0 0.0
    %1244 = vmatpush1.msra.mxu0 0.0
    %1245 = vmatprep.subr.mxu0 0.0
    %1246 = vmatpush1.msra.mxu0 0.0
    %1247 = vmatprep.subr.mxu0 0.0
    %1248 = vmatpush1.msra.mxu0 0.0
    %1249 = vmatprep.subr.mxu0 0.0
    %1250 = vmatpush1.msra.mxu0 0.0
    %1251 = vmatprep.subr.mxu0 0.0
    %1252 = vmatpush1.msra.mxu0 0.0
    %1253 = vmatprep.subr.mxu0 0.0
    %1254 = vmatpush1.msra.mxu0 0.0
    %1255 = vmatprep.subr.mxu0 0.0
    %1256 = vmatpush1.msra.mxu0 0.0
    %1257 = vmatprep.subr.mxu0 0.0
    %1258 = vmatpush1.msra.mxu0 0.0
    %1259 = vmatprep.mubr.f32.mxu0 0.0
    %1260 = vmatmul.mubr.f32.gmra.mrb[0].mxu0 %v1193
    %v1261 = vpop.f32.mrb[0].mxu0
    %v1262 = vadd.f32 %v1187, %v1261
    %v1263 = vpop.f32.mrb[0].mxu0
    %1264 = vdwg.mxu0
    %v1265 = vld [vmem:[%s7] sm:$0x1]
    %v1267 = vlaneseq
    %v1268 = vshrl.u32 %v1267, 7
    %v1269 = vsub.s32 0, %v1268
    %v1270 = vrot.slane %v1265, %v1269
    %v1272 = vadd.f32 %v1262, %v1270
    %v1273 = vmax.f32 %v1272, 0.0
    %v1274 = vld [vmem:[#allocation14] sm:$0xff]
    %v1275 = vld [vmem:[#allocation14 + $0x8] sm:$0xff]
    %v1276 = vld [vmem:[#allocation14 + $0x10] sm:$0xff]
    %v1277 = vld [vmem:[#allocation14 + $0x18] sm:$0xff]
    %v1278 = vld [vmem:[%s9] sm:$0x1]
    %v1280 = vlaneseq
    %v1281 = vshrl.u32 %v1280, 7
    %v1282 = vsub.s32 0, %v1281
    %v1283 = vrot.slane %v1278, %v1282
    %v1286 = vsel %vm295, %v1273, 0
    %1288 = vmatprep.subr.mxu0 0.0
    %1289 = vmatpush1.msra.mxu0 %v1274
    %1290 = vmatprep.subr.mxu0 0.0
    %1291 = vmatpush1.msra.mxu0 %v1275
    %1292 = vmatprep.subr.mxu0 0.0
    %1293 = vmatpush1.msra.mxu0 %v1276
    %1294 = vmatprep.subr.mxu0 0.0
    %1295 = vmatpush1.msra.mxu0 %v1277
    %1296 = vmatprep.subr.mxu0 0.0
    %1297 = vmatpush1.msra.mxu0 0.0
    %1298 = vmatprep.subr.mxu0 0.0
    %1299 = vmatpush1.msra.mxu0 0.0
    %1300 = vmatprep.subr.mxu0 0.0
    %1301 = vmatpush1.msra.mxu0 0.0
    %1302 = vmatprep.subr.mxu0 0.0
    %1303 = vmatpush1.msra.mxu0 0.0
    %1304 = vmatprep.subr.mxu0 0.0
    %1305 = vmatpush1.msra.mxu0 0.0
    %1306 = vmatprep.subr.mxu0 0.0
    %1307 = vmatpush1.msra.mxu0 0.0
    %1308 = vmatprep.subr.mxu0 0.0
    %1309 = vmatpush1.msra.mxu0 0.0
    %1310 = vmatprep.subr.mxu0 0.0
    %1311 = vmatpush1.msra.mxu0 0.0
    %1312 = vmatprep.subr.mxu0 0.0
    %1313 = vmatpush1.msra.mxu0 0.0
    %1314 = vmatprep.subr.mxu0 0.0
    %1315 = vmatpush1.msra.mxu0 0.0
    %1316 = vmatprep.subr.mxu0 0.0
    %1317 = vmatpush1.msra.mxu0 0.0
    %1318 = vmatprep.subr.mxu0 0.0
    %1319 = vmatpush1.msra.mxu0 0.0
    %1320 = vmatprep.subr.mxu0 0.0
    %1321 = vmatpush1.msra.mxu0 0.0
    %1322 = vmatprep.subr.mxu0 0.0
    %1323 = vmatpush1.msra.mxu0 0.0
    %1324 = vmatprep.subr.mxu0 0.0
    %1325 = vmatpush1.msra.mxu0 0.0
    %1326 = vmatprep.subr.mxu0 0.0
    %1327 = vmatpush1.msra.mxu0 0.0
    %1328 = vmatprep.subr.mxu0 0.0
    %1329 = vmatpush1.msra.mxu0 0.0
    %1330 = vmatprep.subr.mxu0 0.0
    %1331 = vmatpush1.msra.mxu0 0.0
    %1332 = vmatprep.subr.mxu0 0.0
    %1333 = vmatpush1.msra.mxu0 0.0
    %1334 = vmatprep.subr.mxu0 0.0
    %1335 = vmatpush1.msra.mxu0 0.0
    %1336 = vmatprep.subr.mxu0 0.0
    %1337 = vmatpush1.msra.mxu0 0.0
    %1338 = vmatprep.subr.mxu0 0.0
    %1339 = vmatpush1.msra.mxu0 0.0
    %1340 = vmatprep.subr.mxu0 0.0
    %1341 = vmatpush1.msra.mxu0 0.0
    %1342 = vmatprep.subr.mxu0 0.0
    %1343 = vmatpush1.msra.mxu0 0.0
    %1344 = vmatprep.subr.mxu0 0.0
    %1345 = vmatpush1.msra.mxu0 0.0
    %1346 = vmatprep.subr.mxu0 0.0
    %1347 = vmatpush1.msra.mxu0 0.0
    %1348 = vmatprep.subr.mxu0 0.0
    %1349 = vmatpush1.msra.mxu0 0.0
    %1350 = vmatprep.subr.mxu0 0.0
    %1351 = vmatpush1.msra.mxu0 0.0
    %1352 = vmatprep.mubr.f32.mxu0 0.0
    %1353 = vmatmul.mubr.f32.gmra.mrb[0].mxu0 %v1286
    %v1354 = vpop.f32.mrb[0].mxu0
    %v1355 = vadd.f32 %v1283, %v1354
    %v1356 = vpop.f32.mrb[0].mxu0
    %1357 = vdwg.mxu0
    %1358 = vst.msk [vmem:[#allocation15] sm:$0xff] %vm295, %v1355
    // Predicated region
    $region70: #{tpu_custom_call.1} parent=1 // pred_check
      _
    $region71: #{tpu_custom_call.1} parent=1 // pred_check_branch
      %1360 = sbr.rel (0) target = $region73
    $region72: #{tpu_custom_call.1} parent=1 // pred_region
      %s1362 = ssub.s32 128, 128
      %1363 = vsyncadd [#allocation5], %s1362
      %s1365 = sshll.u32 [#allocation15], 4
      %s1366 = int_to_ptr.vmem [resolvable:$true] %s1365
      %1368 = dma.vmem_to_hbm [thread:$0]  %s1366, 128, %s10, [#allocation5]
    $region73: #{tpu_custom_call.1} parent=1 // pred_fallthru
      _
    // Predicated region
    $region74: #{tpu_custom_call.1} parent=1 // pred_check
      _
    $region75: #{tpu_custom_call.1} parent=1 // pred_check_branch
      %1370 = sbr.rel (0) target = $region77
    $region76: #{tpu_custom_call.1} parent=1 // pred_region
      %1371 = dma.done [#allocation5], 128
    $region77: #{tpu_custom_call.1} parent=1 // pred_fallthru
      _
    %1372 = vsyncpa [#allocation4], 1
    %1373 = vsyncpa [#allocation7], 1
    %1374 = vsyncpa [#allocation10], 1
    %1375 = vsyncpa [#allocation13], 1
    %1376 = vsyncpa [#allocation5], 1

</llo_original>
